<compile_context>
chip_gen: v7x
topology: tpu7x:2x2x1
jax: 0.10.0
libtpu: 0.0.40
codegen_flags: <defaults>
</compile_context>

<pallas_src>
import jax
import jax.numpy as jnp
from jax.experimental import pallas as pl
from jax.experimental.pallas import tpu as pltpu


def _round_up(x, m):
    return ((x + m - 1) // m) * m


def _pick_tile(dim_padded, target):
    """Largest multiple of 128 that divides dim_padded and is <= target."""
    t = max(128, (min(target, dim_padded) // 128) * 128)
    while dim_padded % t:
        t -= 128
    return t


# ---------------------------------------------------------------------------
# Pallas kernels: tiled matmul, bias fused on the last reduction step.
# ---------------------------------------------------------------------------
def _linear_kernel_acc_out(x_ref, w_ref, b_ref, o_ref):
    """f32 output doubles as the accumulator (saves tm*tn*4 B VMEM and the
    finalize copy).  Activation tile is cast to the weight dtype in-kernel."""
    k = pl.program_id(2)

    @pl.when(k == 0)
    def _init():
        o_ref[...] = jnp.zeros_like(o_ref)

    o_ref[...] += jnp.dot(
        x_ref[...].astype(w_ref.dtype), w_ref[...],
        preferred_element_type=jnp.float32,
    )

    @pl.when(k == pl.num_programs(2) - 1)
    def _finalize():
        o_ref[...] += b_ref[...]


def _linear_kernel_scratch(x_ref, w_ref, b_ref, o_ref, acc_ref):
    """Narrow-output variant: f32 scratch accumulator, cast on writeback."""
    k = pl.program_id(2)

    @pl.when(k == 0)
    def _init():
        acc_ref[...] = jnp.zeros_like(acc_ref)

    acc_ref[...] += jnp.dot(
        x_ref[...].astype(w_ref.dtype), w_ref[...],
        preferred_element_type=jnp.float32,
    )

    @pl.when(k == pl.num_programs(2) - 1)
    def _finalize():
        o_ref[...] = (acc_ref[...] + b_ref[...]).astype(o_ref.dtype)


def pallas_linear(x2d, wp, bp, n_out, *, tm=512, tn=512, tk=1024):
    """x2d: (M, K) activations (typically f32, left in their HBM dtype).
    wp:  (Kp, Np) weight, pre-padded to multiples of 128, compute dtype.
    bp:  (1, Np) f32 bias, pre-padded.
    n_out: original (unpadded) N.
    Returns (M, n_out) in x2d.dtype."""
    M, K = x2d.shape
    Kp, Np = wp.shape
    out_dtype = x2d.dtype

    # Pad activations only along M (to 128, not to tm) and K (to match the
    # pre-padded weight).  For aligned shapes this is a no-op -> no extra
    # HBM pass and no epilogue slice.
    Mp = _round_up(M, 128)
    if (Mp, Kp) != (M, K):
        x2d = jnp.pad(x2d, ((0, Mp - M), (0, Kp - K)))

    # Tiles must divide the padded dims (keeps the grid exact and lets us
    # skip the output slice when nothing was padded).
    tm = _pick_tile(Mp, tm)
    tn = _pick_tile(Np, tn)
    tk = _pick_tile(Kp, tk)

    # v7x megacore: expose >= 2 blocks across the two "parallel" axes so
    # both TensorCores get work (no effect on single-TC v5e/v6e).
    if (Mp // tm) * (Np // tn) < 2:
        if Mp >= 256 and Mp >= Np:
            tm = _pick_tile(Mp, Mp // 2)
        elif Np >= 256:
            tn = _pick_tile(Np, Np // 2)

    grid = (Mp // tm, Np // tn, Kp // tk)

    use_scratch = out_dtype != jnp.float32
    kernel = _linear_kernel_scratch if use_scratch else _linear_kernel_acc_out
    scratch = [pltpu.VMEM((tm, tn), jnp.float32)] if use_scratch else []

    x_bytes = jnp.dtype(x2d.dtype).itemsize
    w_bytes = jnp.dtype(wp.dtype).itemsize
    o_bytes = jnp.dtype(out_dtype).itemsize
    # Double-buffered inputs + output tile (+ optional scratch).
    vmem_need = (2 * (tm * tk * x_bytes + tk * tn * w_bytes + tn * 4)
                 + 2 * tm * tn * o_bytes
                 + (tm * tn * 4 if use_scratch else 0))
    # v5e's scoped default is only 16 MiB -> raise explicitly; cap at 48 MiB
    # to keep headroom inside v7x's 64 MiB physical VMEM.
    vmem_limit = int(min(48 << 20, max(32 << 20, 2 * vmem_need)))

    cost = pl.CostEstimate(
        flops=2 * Mp * Np * Kp,
        transcendentals=0,
        bytes_accessed=(Mp * Kp * x_bytes) * (Np // tn)
                       + (Kp * Np * w_bytes) * (Mp // tm)
                       + Mp * Np * o_bytes,
    )

    out = pl.pallas_call(
        kernel,
        out_shape=jax.ShapeDtypeStruct((Mp, Np), out_dtype),
        grid_spec=pltpu.PrefetchScalarGridSpec(
            num_scalar_prefetch=0,
            grid=grid,
            in_specs=[
                pl.BlockSpec((tm, tk), lambda i, j, k: (i, k)),
                pl.BlockSpec((tk, tn), lambda i, j, k: (k, j)),
                pl.BlockSpec((1, tn), lambda i, j, k: (0, j)),
            ],
            out_specs=pl.BlockSpec((tm, tn), lambda i, j, k: (i, j)),
            scratch_shapes=scratch,
        ),
        compiler_params=pltpu.CompilerParams(
            dimension_semantics=("parallel", "parallel", "arbitrary"),
            vmem_limit_bytes=vmem_limit,
        ),
        cost_estimate=cost,
    )(x2d, wp, bp)

    # Slice only when padding was actually added (otherwise it's a free
    # identity and no extra Mp*Np copy pass is emitted).
    if Mp != M or Np != n_out:
        out = out[:M, :n_out]
    return out


# ---------------------------------------------------------------------------
# The wrapped "module": a Linear layer whose compute runs in the Pallas kernel
# ---------------------------------------------------------------------------
class Linear:
    """y = x @ W + b.  compute_dtype=bf16 feeds the MXU at full rate; pass
    jnp.float32 for bit-faithful f32 operands (reduced MXU rate)."""

    def __init__(self, w, b, *, compute_dtype=jnp.bfloat16,
                 min_pallas_elems=1 << 20):
        self.w = w          # originals kept for the tiny-problem f32 fallback
        self.b = b
        self.n_out = w.shape[-1]
        self.min_pallas_elems = min_pallas_elems

        # Hoisted out of the hot path: cast + pad the static weight/bias once
        # at init instead of paying a full K*N read+write every forward.
        K, N = w.shape
        Kp, Np = _round_up(K, 128), _round_up(N, 128)
        wp = w.astype(compute_dtype)
        if (Kp, Np) != (K, N):
            wp = jnp.pad(wp, ((0, Kp - K), (0, Np - N)))
        bp = b.astype(jnp.float32).reshape(1, N)
        if Np != N:
            bp = jnp.pad(bp, ((0, 0), (0, Np - N)))
        self.wp = wp
        self.bp = bp

    def __call__(self, x, *args, **kwargs):
        lead = x.shape[:-1]
        K = x.shape[-1]
        x2d = x.reshape((-1, K))
        M = x2d.shape[0]
        if M * K * self.n_out < self.min_pallas_elems:
            # Tiny problems: per-grid-step (~0.35 us) + DMA setup overhead
            # dominates; use XLA's fused dot in full f32.
            y2d = (x2d @ self.w + self.b).astype(x.dtype)
        else:
            y2d = pallas_linear(x2d, self.wp, self.bp, self.n_out)
        return y2d.reshape(lead + (self.n_out,))


# ---------------------------------------------------------------------------
# NoParam: exact semantic equivalent of the PyTorch module.  The wrapped
# module sits in a plain list (nothing "registered"); forward delegates with
# no compute of its own.
# ---------------------------------------------------------------------------
class NoParam:
    def __init__(self, mod):
        self.mod = [mod]

    def cuda(self):  # no-op on JAX/TPU; kept for interface parity
        pass

    def forward(self, x, *args, **kwargs):
        return self.mod[0](x, *args, **kwargs)

    __call__ = forward


if __name__ == "__main__":
    key = jax.random.PRNGKey(0)
    k_x, k_w, k_b, k_x2, k_w2, k_b2, k_x3, k_w3, k_b3 = jax.random.split(key, 9)

    # --- main case: exercises the tiled Pallas path -------------------------
    # M = 256, K = 2048 (2 k-steps at tk=1024), N = 384; the megacore clamp
    # splits j into >=2 blocks.  Tests init/accumulate/finalize, bias fusion,
    # lane-dense stores, and the "no epilogue slice" path (all dims aligned).
    batch, seq, hidden, out = 2, 128, 2048, 384
    x = jax.random.normal(k_x, (batch, seq, hidden), dtype=jnp.float32)
    w = jax.random.normal(k_w, (hidden, out), dtype=jnp.float32) * 0.02
    b = jax.random.normal(k_b, (out,), dtype=jnp.float32) * 0.02

    noparam = NoParam(Linear(w, b))
    y = jax.block_until_ready(noparam(x))
    assert y.shape == (batch, seq, out)

    x2d = x.reshape(-1, hidden)
    # Tight check against a reference using the same bf16 operand rounding.
    y_ref_bf16 = (
        jnp.dot(x2d.astype(jnp.bfloat16), w.astype(jnp.bfloat16),
                preferred_element_type=jnp.float32) + b
    ).reshape(batch, seq, out)
    assert jnp.allclose(y, y_ref_bf16, atol=2e-3, rtol=2e-3)
    # Loose check against the full-f32 reference (bf16 operand rounding).
    y_ref_f32 = (x2d @ w + b).reshape(batch, seq, out)
    assert jnp.allclose(y, y_ref_f32, atol=5e-2, rtol=5e-2)

    # --- padded case: unaligned M/K/N exercises pad + epilogue slice --------
    bm, sm, hm, om = 1, 70, 300, 200
    xm = jax.random.normal(k_x3, (bm, sm, hm), dtype=jnp.float32)
    wm = jax.random.normal(k_w3, (hm, om), dtype=jnp.float32) * 0.02
    bm_ = jax.random.normal(k_b3, (om,), dtype=jnp.float32) * 0.02
    lin_m = Linear(wm, bm_, min_pallas_elems=1)   # force the Pallas path
    ym = jax.block_until_ready(NoParam(lin_m)(xm))
    ym_ref = (
        jnp.dot(xm.reshape(-1, hm).astype(jnp.bfloat16),
                wm.astype(jnp.bfloat16),
                preferred_element_type=jnp.float32) + bm_
    ).reshape(bm, sm, om)
    assert ym.shape == (bm, sm, om)
    assert jnp.allclose(ym, ym_ref, atol=2e-3, rtol=2e-3)

    # --- tiny case: exercises the jnp.dot fallback (Pallas overhead would
    # dominate at this size) and the NoParam pass-through semantics ---------
    bs, ss, hs, os_ = 2, 8, 32, 32
    xs = jax.random.normal(k_x2, (bs, ss, hs), dtype=jnp.float32)
    ws = jax.random.normal(k_w2, (hs, os_), dtype=jnp.float32) * 0.02
    bsml = jax.random.normal(k_b2, (os_,), dtype=jnp.float32) * 0.02
    ys = jax.block_until_ready(NoParam(Linear(ws, bsml))(xs))
    ys_ref = (xs.reshape(-1, hs) @ ws + bsml).reshape(bs, ss, os_)
    assert ys.shape == (bs, ss, os_)
    assert jnp.allclose(ys, ys_ref, atol=1e-4, rtol=1e-4)

    print("KERNEL_OK")
</pallas_src>

<mosaic_0001>
module attributes {stable_mosaic.version = 11 : i64} {
  func.func @_linear_kernel_acc_out(%arg0: i32, %arg1: i32, %arg2: i32, %arg3: memref<256x1024xf32, #tpu.memory_space<vmem>>, %arg4: memref<1024x128xbf16, #tpu.memory_space<vmem>>, %arg5: memref<1x128xf32, #tpu.memory_space<vmem>>, %arg6: memref<256x128xf32, #tpu.memory_space<vmem>>) attributes {dimension_semantics = [#tpu.dimension_semantics<parallel>, #tpu.dimension_semantics<parallel>, #tpu.dimension_semantics<arbitrary>], iteration_bounds = array<i64: 1, 3, 2>, scalar_prefetch = 0 : i64, scratch_operands = 0 : i64, tpu.core_type = #tpu.core_type<tc>, window_params = [{transform_indices = @transform_0, window_bounds = array<i64: 256, 1024>}, {transform_indices = @transform_1, window_bounds = array<i64: 1024, 128>}, {transform_indices = @transform_2, window_bounds = array<i64: 1, 128>}, {transform_indices = @transform_3, window_bounds = array<i64: 256, 128>}]} {
    %c0_i32 = arith.constant 0 : i32
    %0 = arith.cmpi eq, %arg2, %c0_i32 : i32
    %1 = arith.extui %0 : i1 to i32
    %c0_i32_0 = arith.constant 0 : i32
    %2 = arith.cmpi ne, %1, %c0_i32_0 : i32
    scf.if %2 {
      %cst_9 = arith.constant 0.000000e+00 : f32
      %13 = vector.broadcast %cst_9 : f32 to vector<256x128xf32>
      %c0_10 = arith.constant 0 : index
      %c0_11 = arith.constant 0 : index
      %14 = vector.load %arg6[%c0_10, %c0_11] : memref<256x128xf32, #tpu.memory_space<vmem>>, vector<256x128xf32>
      tpu.vector_store %arg6[%c0_10, %c0_11], %13 {strides = array<i32>} : memref<256x128xf32, #tpu.memory_space<vmem>>, vector<256x128xf32>,
    } else {
    }
    %c0 = arith.constant 0 : index
    %c0_1 = arith.constant 0 : index
    %3 = vector.load %arg6[%c0, %c0_1] : memref<256x128xf32, #tpu.memory_space<vmem>>, vector<256x128xf32>
    %c0_2 = arith.constant 0 : index
    %c0_3 = arith.constant 0 : index
    %4 = vector.load %arg3[%c0_2, %c0_3] : memref<256x1024xf32, #tpu.memory_space<vmem>>, vector<256x1024xf32>
    %5 = arith.truncf %4 : vector<256x1024xf32> to vector<256x1024xbf16>
    %c0_4 = arith.constant 0 : index
    %c0_5 = arith.constant 0 : index
    %6 = vector.load %arg4[%c0_4, %c0_5] : memref<1024x128xbf16, #tpu.memory_space<vmem>>, vector<1024x128xbf16>
    %cst = arith.constant dense<0.000000e+00> : vector<256x128xf32>
    %7 = tpu.matmul %5, %6, %cst {dimension_numbers = #tpu.dot_dimension_numbers<[1], [0], [0], [1], [0, 0, 1, 1], [], []>} : vector<256x1024xbf16>, vector<1024x128xbf16>, vector<256x128xf32> -> vector<256x128xf32>
    %8 = arith.addf %3, %7 : vector<256x128xf32>
    %c0_6 = arith.constant 0 : index
    %c0_7 = arith.constant 0 : index
    %9 = vector.load %arg6[%c0_6, %c0_7] : memref<256x128xf32, #tpu.memory_space<vmem>>, vector<256x128xf32>
    tpu.vector_store %arg6[%c0_6, %c0_7], %8 {strides = array<i32>} : memref<256x128xf32, #tpu.memory_space<vmem>>, vector<256x128xf32>,
    %c1_i32 = arith.constant 1 : i32
    %10 = arith.cmpi eq, %arg2, %c1_i32 : i32
    %11 = arith.extui %10 : i1 to i32
    %c0_i32_8 = arith.constant 0 : i32
    %12 = arith.cmpi ne, %11, %c0_i32_8 : i32
    scf.if %12 {
      %c0_9 = arith.constant 0 : index
      %c0_10 = arith.constant 0 : index
      %13 = vector.load %arg6[%c0_9, %c0_10] : memref<256x128xf32, #tpu.memory_space<vmem>>, vector<256x128xf32>
      %c0_11 = arith.constant 0 : index
      %c0_12 = arith.constant 0 : index
      %14 = vector.load %arg5[%c0_11, %c0_12] : memref<1x128xf32, #tpu.memory_space<vmem>>, vector<1x128xf32>
      %15 = vector.broadcast %14 : vector<1x128xf32> to vector<256x128xf32>
      %16 = arith.addf %13, %15 : vector<256x128xf32>
      %c0_13 = arith.constant 0 : index
      %c0_14 = arith.constant 0 : index
      %17 = vector.load %arg6[%c0_13, %c0_14] : memref<256x128xf32, #tpu.memory_space<vmem>>, vector<256x128xf32>
      tpu.vector_store %arg6[%c0_13, %c0_14], %16 {strides = array<i32>} : memref<256x128xf32, #tpu.memory_space<vmem>>, vector<256x128xf32>,
    } else {
    }
    return
  }
  func.func @transform_0(%arg0: i32, %arg1: i32, %arg2: i32) -> (i32, i32) {
    %c0_i32 = arith.constant 0 : i32
    return %arg0, %arg2 : i32, i32
  }
  func.func @transform_1(%arg0: i32, %arg1: i32, %arg2: i32) -> (i32, i32) {
    %c0_i32 = arith.constant 0 : i32
    return %arg2, %arg1 : i32, i32
  }
  func.func @transform_2(%arg0: i32, %arg1: i32, %arg2: i32) -> (i32, i32) {
    %c0_i32 = arith.constant 0 : i32
    %c0_i32_0 = arith.constant 0 : i32
    return %c0_i32, %arg1 : i32, i32
  }
  func.func @transform_3(%arg0: i32, %arg1: i32, %arg2: i32) -> (i32, i32) {
    %c0_i32 = arith.constant 0 : i32
    return %arg0, %arg1 : i32, i32
  }
}

</mosaic_0001>

<llo_original>
// kernel: tpu_custom_call.1
$region0: #{tpu_custom_call.1}
  #allocation0 [shape = 'u32[]', space=smem, size = 0x4, offset = 0x4, fixed_abs, tag = 'smem constant byte address 0x4 - core index']
  #allocation1 [shape = 'u32[144,128]{1,0:T(1,128)}', space=vmem, size = 0x12000, scoped, tag = 'internal scratch']
  %s0 = inlined_call_operand.hbm [shape: f32[256,2048], index: 0, kind: input, shape index: {}]
  %s1 = inlined_call_operand.hbm [shape: bf16[2048,384], index: 1, kind: input, shape index: {}]
  %s2 = inlined_call_operand.hbm [shape: f32[1,384], index: 2, kind: input, shape index: {}]
  %s3 = inlined_call_operand.hbm [shape: f32[256,384], index: 3, kind: output, shape index: {}]
  %s4 = sld [smem:[#allocation0]]
  $region65: #{tpu_custom_call.1} parent=0
    _
  %s6 = ssub.s32 1, %s4
  %s7 = scalar_select 0, %s6, %s4
  $region1: #{tpu_custom_call.1} parent=0
    #allocation2 [shape = 'u8[2097152]{0}', space=vmem, size = 0x200000, scoped, tag = 'input window, operand 0']
    #allocation3 [shape = 's32[2]{0}', space=sflag, size = 0x8, scoped, tag = 'scoped memory for tpu_custom_call.1']
    #allocation4 [shape = 's32[2]{0}', space=sflag, size = 0x8, scoped, tag = 'scoped memory for tpu_custom_call.1']
    #allocation5 [shape = 'u8[524288]{0}', space=vmem, size = 0x80000, scoped, tag = 'input window, operand 1']
    #allocation6 [shape = 's32[2]{0}', space=sflag, size = 0x8, scoped, tag = 'scoped memory for tpu_custom_call.1']
    #allocation7 [shape = 'u8[1024]{0}', space=vmem, size = 0x400, scoped, tag = 'input window, operand 2']
    #allocation8 [shape = 'u8[262144]{0}', space=vmem, size = 0x40000, scoped, tag = 'output window, operand 0']
    %8 = vsyncpa [#allocation3], 0
    %s9 = scalar_lea.sflag [#allocation3], 1
    %10 = vsyncpa %s9, 0
    %11 = vsyncpa [#allocation6], 0
    %s12 = scalar_lea.sflag [#allocation6], 1
    %13 = vsyncpa %s12, 0
    %14 = vsyncpa [#allocation4], 0
    %s15 = scalar_lea.sflag [#allocation4], 1
    %16 = vsyncpa %s15, 0
    loop: start=0, step=1, limit=8
    $region2: #{tpu_custom_call.1} parent=1 // loop_pre_header
      _
    $region3: #{tpu_custom_call.1} parent=1 // loop_header
      %s18 = sphi 0, %s22
      %p19 = scmp.ge.s32.totalorder %s18, 8
      %s25 = sphi 0, %s44
      %s26 = sphi 0, %s40
      %s27 = sphi 0, %s36
      %s28 = sphi 0, %s25
      %s29 = sphi 0, %s26
      %s30 = sphi 0, %s27
      %s31 = sphi 0, %s28
      %s32 = sphi 0, %s29
      %s33 = sphi 0, %s30
      %s49 = sphi 0, %s51
      %s52 = sphi 0, %s49
      %s53 = sphi 0, %s52
      %s69 = sphi 0, %s53
      %s77 = sphi 0, %s79
      %s80 = sphi 0, %s77
      %s81 = sphi 0, %s80
      %s97 = sphi 0, %s81
      %s103 = sphi 0, %s105
      %s106 = sphi 0, %s103
      %s107 = sphi 0, %s106
      %s123 = sphi 0, %s107
      %s131 = sphi 0, %s133
      %s134 = sphi 0, %s131
      %s135 = sphi 0, %s134
      %s151 = sphi 0, %s135
    $region4: #{tpu_custom_call.1} parent=1 // loop_header_branch
      %21 = sbr.rel (%p19) target = $region8
    $region5: #{tpu_custom_call.1} parent=1 // loop_body
      %s23 = ssub.s32 %s18, 1
      %s24 = ssub.s32 %s18, 2
      %s34 = sadd.s32 1, %s27
      %p35 = scmp.ge.s32.totalorder %s34, 2
      %s36 = scalar_select %p35, 0, %s34
      %s37 = sadd.s32 1, %s26
      %s38 = scalar_select %p35, %s37, %s26
      %p39 = scmp.ge.s32.totalorder %s38, 3
      %s40 = scalar_select %p39, 0, %s38
      %s41 = sadd.s32 1, %s25
      %s42 = scalar_select %p39, %s41, %s25
      %p43 = scmp.ge.s32.totalorder %s42, 1
      %s44 = scalar_select %p43, 0, %s42
      %s45 = ssub.s32 %s25, %s44
      %s46 = ssub.s32 %s27, %s36
      %s47 = sor.u32 %s45, %s46
      %p48 = scmp.eq.s32.totalorder %s47, 0
      %s50 = sadd.s32 %s49, 1
      %s51 = scalar_select %p48, %s49, %s50
      %p54 = pneg %p48
      %p55 = scmp.eq.s32.totalorder %s18, 5
      %p56 = por %p54, %p55
      %p57 = scmp.ne.s32.totalorder %s49, %s52
      %p58 = scmp.eq.s32.totalorder %s18, 0
      %p59 = por %p57, %p58
      %p60 = scmp.ne.s32.totalorder %s49, %s52
      %p61 = scmp.eq.s32.totalorder %s23, 5
      %p62 = por %p60, %p61
      %p63 = scmp.ne.s32.totalorder %s52, %s53
      %p64 = scmp.eq.s32.totalorder %s23, 0
      %p65 = por %p63, %p64
      %p66 = scmp.ne.s32.totalorder %s52, %s53
      %p67 = scmp.eq.s32.totalorder %s24, 5
      %p68 = por %p66, %p67
      %p70 = scmp.ne.s32.totalorder %s53, %s69
      %p71 = scmp.eq.s32.totalorder %s24, 0
      %p72 = por %p70, %p71
      %s73 = ssub.s32 %s27, %s36
      %s74 = ssub.s32 %s26, %s40
      %s75 = sor.u32 %s73, %s74
      %p76 = scmp.eq.s32.totalorder %s75, 0
      %s78 = sadd.s32 %s77, 1
      %s79 = scalar_select %p76, %s77, %s78
      %p82 = pneg %p76
      %p83 = scmp.eq.s32.totalorder %s18, 5
      %p84 = por %p82, %p83
      %p85 = scmp.ne.s32.totalorder %s77, %s80
      %p86 = scmp.eq.s32.totalorder %s18, 0
      %p87 = por %p85, %p86
      %p88 = scmp.ne.s32.totalorder %s77, %s80
      %p89 = scmp.eq.s32.totalorder %s23, 5
      %p90 = por %p88, %p89
      %p91 = scmp.ne.s32.totalorder %s80, %s81
      %p92 = scmp.eq.s32.totalorder %s23, 0
      %p93 = por %p91, %p92
      %p94 = scmp.ne.s32.totalorder %s80, %s81
      %p95 = scmp.eq.s32.totalorder %s24, 5
      %p96 = por %p94, %p95
      %p98 = scmp.ne.s32.totalorder %s81, %s97
      %p99 = scmp.eq.s32.totalorder %s24, 0
      %p100 = por %p98, %p99
      %s101 = ssub.s32 %s26, %s40
      %p102 = scmp.eq.s32.totalorder %s101, 0
      %s104 = sadd.s32 %s103, 1
      %s105 = scalar_select %p102, %s103, %s104
      %p108 = pneg %p102
      %p109 = scmp.eq.s32.totalorder %s18, 5
      %p110 = por %p108, %p109
      %p111 = scmp.ne.s32.totalorder %s103, %s106
      %p112 = scmp.eq.s32.totalorder %s18, 0
      %p113 = por %p111, %p112
      %p114 = scmp.ne.s32.totalorder %s103, %s106
      %p115 = scmp.eq.s32.totalorder %s23, 5
      %p116 = por %p114, %p115
      %p117 = scmp.ne.s32.totalorder %s106, %s107
      %p118 = scmp.eq.s32.totalorder %s23, 0
      %p119 = por %p117, %p118
      %p120 = scmp.ne.s32.totalorder %s106, %s107
      %p121 = scmp.eq.s32.totalorder %s24, 5
      %p122 = por %p120, %p121
      %p124 = scmp.ne.s32.totalorder %s107, %s123
      %p125 = scmp.eq.s32.totalorder %s24, 0
      %p126 = por %p124, %p125
      %s127 = ssub.s32 %s25, %s44
      %s128 = ssub.s32 %s26, %s40
      %s129 = sor.u32 %s127, %s128
      %p130 = scmp.eq.s32.totalorder %s129, 0
      %s132 = sadd.s32 %s131, 1
      %s133 = scalar_select %p130, %s131, %s132
      %p136 = pneg %p130
      %p137 = scmp.eq.s32.totalorder %s18, 5
      %p138 = por %p136, %p137
      %p139 = scmp.ne.s32.totalorder %s131, %s134
      %p140 = scmp.eq.s32.totalorder %s18, 0
      %p141 = por %p139, %p140
      %p142 = scmp.ne.s32.totalorder %s131, %s134
      %p143 = scmp.eq.s32.totalorder %s23, 5
      %p144 = por %p142, %p143
      %p145 = scmp.ne.s32.totalorder %s134, %s135
      %p146 = scmp.eq.s32.totalorder %s23, 0
      %p147 = por %p145, %p146
      %p148 = scmp.ne.s32.totalorder %s134, %s135
      %p149 = scmp.eq.s32.totalorder %s24, 5
      %p150 = por %p148, %p149
      %p152 = scmp.ne.s32.totalorder %s135, %s151
      %p153 = scmp.eq.s32.totalorder %s24, 0
      %p154 = por %p152, %p153
      %p155 = scmp.le.s32.totalorder 1, %s18
      %p156 = scmp.lt.s32.totalorder %s18, 7
      %p157 = pnand %p155, %p156
      %p158 = pneg %p157
      // Predicated region
      $region9: #{tpu_custom_call.1} parent=5 // pred_check
        _
      $region10: #{tpu_custom_call.1} parent=5 // pred_check_branch
        %160 = sbr.rel (%p157) target = $region12
      $region11: #{tpu_custom_call.1} parent=5 // pred_region
        %s161 = ssub.s32 %s18, 1
      $region12: #{tpu_custom_call.1} parent=5 // pred_fallthru
        _
      %p162 = scmp.lt.s32.totalorder %s18, 6
      // Predicated region
      $region13: #{tpu_custom_call.1} parent=5 // pred_check
        %p163 = pneg %p162
      $region14: #{tpu_custom_call.1} parent=5 // pred_check_branch
        %165 = sbr.rel (%p163) target = $region16
      $region15: #{tpu_custom_call.1} parent=5 // pred_region
        // Predicated region
        $region17: #{tpu_custom_call.1} parent=15 // pred_check
          %p166 = pneg %p59
        $region18: #{tpu_custom_call.1} parent=15 // pred_check_branch
          %168 = sbr.rel (%p166) target = $region20
        $region19: #{tpu_custom_call.1} parent=15 // pred_region
          %s169 = sand.u32 %s49, 1
          %s170 = scalar_lea.sflag [#allocation3], %s169
          %s171 = sand.u32 %s49, 1
          %s172 = smul.addr %s171, 2048
          %s173 = scalar_lea.vmem [#allocation2], %s172
          %s174 = smul.u32 32, %s25
          %s175 = smul.u32 8, %s27
          %s177 = ssub.s32 32768, 32768
          %178 = vsyncadd %s170, %s177
          %s179 = smul.addr %s174, 16
          %s180 = sadd.s32 %s175, %s179
          %s181 = smul.addr %s180, 128
          %s182 = scalar_lea.hbm %s0, %s181
          %s183 = sshll.u32 %s173, 4
          %s184 = int_to_ptr.vmem [resolvable:$true] %s183
          %189 = dma.hbm_to_vmem [thread:$0]  %s182, 32768, %s184, %s170, 2048, 1024, 64
        $region20: #{tpu_custom_call.1} parent=15 // pred_fallthru
          _
        // Predicated region
        $region21: #{tpu_custom_call.1} parent=15 // pred_check
          %p190 = pneg %p87
        $region22: #{tpu_custom_call.1} parent=15 // pred_check_branch
          %192 = sbr.rel (%p190) target = $region24
        $region23: #{tpu_custom_call.1} parent=15 // pred_region
          %s193 = sand.u32 %s18, 1
          %s194 = scalar_lea.sflag [#allocation6], %s193
          %s195 = sand.u32 %s77, 1
          %s196 = smul.addr %s195, 512
          %s197 = scalar_lea.vmem [#allocation5], %s196
          %s198 = smul.u32 128, %s27
          %s200 = ssub.s32 8192, 8192
          %201 = vsyncadd %s194, %s200
          %s202 = smul.addr %s198, 3
          %s203 = sadd.s32 %s26, %s202
          %s204 = smul.addr %s203, 64
          %s205 = scalar_lea.hbm %s1, %s204
          %s206 = sshll.u32 %s197, 4
          %s207 = int_to_ptr.vmem [resolvable:$true] %s206
          %212 = dma.hbm_to_vmem [thread:$0]  %s205, 8192, %s207, %s194, 192, 64, 4
        $region24: #{tpu_custom_call.1} parent=15 // pred_fallthru
          _
        // Predicated region
        $region25: #{tpu_custom_call.1} parent=15 // pred_check
          %p213 = pneg %p113
        $region26: #{tpu_custom_call.1} parent=15 // pred_check_branch
          %215 = sbr.rel (%p213) target = $region28
        $region27: #{tpu_custom_call.1} parent=15 // pred_region
          %s216 = sand.u32 %s18, 1
          %s217 = scalar_lea.sflag [#allocation6], %s216
          %s218 = sand.u32 %s103, 1
          %s219 = scalar_lea.vmem [#allocation7], %s218
          %s221 = ssub.s32 16, 16
          %222 = vsyncadd %s217, %s221
          %s223 = smul.addr %s26, 16
          %s224 = scalar_lea.hbm %s2, %s223
          %s226 = sshll.u32 %s219, 4
          %s227 = int_to_ptr.vmem [resolvable:$true] %s226
          %229 = dma.hbm_to_vmem [thread:$0]  %s224, 16, %s227, %s217
        $region28: #{tpu_custom_call.1} parent=15 // pred_fallthru
          _
      $region16: #{tpu_custom_call.1} parent=5 // pred_fallthru
        _
      %p230 = scmp.le.s32.totalorder 1, %s18
      %p231 = scmp.lt.s32.totalorder %s18, 7
      %p232 = pnand %p230, %p231
      %p233 = pneg %p232
      // Predicated region
      $region29: #{tpu_custom_call.1} parent=5 // pred_check
        _
      $region30: #{tpu_custom_call.1} parent=5 // pred_check_branch
        %235 = sbr.rel (%p232) target = $region32
      $region31: #{tpu_custom_call.1} parent=5 // pred_region
        %s236 = ssub.s32 %s18, 1
        %s237 = sand.u32 %s52, 1
        %s238 = scalar_lea.sflag [#allocation3], %s237
        %s239 = sand.u32 %s52, 1
        %s240 = smul.addr %s239, 2048
        %s241 = scalar_lea.vmem [#allocation2], %s240
        // Predicated region
        $region33: #{tpu_custom_call.1} parent=31 // pred_check
          %p242 = pneg %p65
        $region34: #{tpu_custom_call.1} parent=31 // pred_check_branch
          %244 = sbr.rel (%p242) target = $region36
        $region35: #{tpu_custom_call.1} parent=31 // pred_region
          %245 = dma.done %s238, 32768
        $region36: #{tpu_custom_call.1} parent=31 // pred_fallthru
          _
        %s246 = sand.u32 %s23, 1
        %s247 = scalar_lea.sflag [#allocation6], %s246
        %s248 = sand.u32 %s80, 1
        %s249 = smul.addr %s248, 512
        %s250 = scalar_lea.vmem [#allocation5], %s249
        // Predicated region
        $region37: #{tpu_custom_call.1} parent=31 // pred_check
          %p251 = pneg %p93
        $region38: #{tpu_custom_call.1} parent=31 // pred_check_branch
          %253 = sbr.rel (%p251) target = $region40
        $region39: #{tpu_custom_call.1} parent=31 // pred_region
          %254 = dma.done %s247, 8192
        $region40: #{tpu_custom_call.1} parent=31 // pred_fallthru
          _
        %s255 = sand.u32 %s23, 1
        %s256 = scalar_lea.sflag [#allocation6], %s255
        %s257 = sand.u32 %s106, 1
        %s258 = scalar_lea.vmem [#allocation7], %s257
        // Predicated region
        $region41: #{tpu_custom_call.1} parent=31 // pred_check
          %p259 = pneg %p119
        $region42: #{tpu_custom_call.1} parent=31 // pred_check_branch
          %261 = sbr.rel (%p259) target = $region44
        $region43: #{tpu_custom_call.1} parent=31 // pred_region
          %262 = dma.done %s256, 16
        $region44: #{tpu_custom_call.1} parent=31 // pred_fallthru
          _
        %s263 = sand.u32 %s52, 1
        %s264 = scalar_lea.sflag [#allocation3], %s263
        %s265 = sand.u32 %s52, 1
        %s266 = smul.addr %s265, 2048
        %s267 = scalar_lea.vmem [#allocation2], %s266
        %p268 = pneg %p65
        %p269 = pneg %p62
        %s270 = sand.u32 %s23, 1
        %s271 = scalar_lea.sflag [#allocation6], %s270
        %s272 = sand.u32 %s80, 1
        %s273 = smul.addr %s272, 512
        %s274 = scalar_lea.vmem [#allocation5], %s273
        %p275 = pneg %p93
        %p276 = pneg %p90
        %s277 = sand.u32 %s23, 1
        %s278 = scalar_lea.sflag [#allocation6], %s277
        %s279 = sand.u32 %s106, 1
        %s280 = scalar_lea.vmem [#allocation7], %s279
        %p281 = pneg %p119
        %p282 = pneg %p116
        %p283 = pneg %p147
        %p284 = pneg %p144
        %s285 = sand.u32 %s134, 1
        %s286 = scalar_lea.sflag [#allocation4], %s285
        %s287 = sand.u32 %s134, 1
        %s288 = smul.addr %s287, 256
        %s289 = scalar_lea.vmem [#allocation8], %s288
        %s290 = smul.u32 32, %s28
        %s291 = smul.u32 8, %s30
        %s292 = smul.u32 128, %s30
        %s293 = smul.u32 32, %s28
        %p295 = scmp.eq.s32.totalorder %s30, 0
        // Predicated region
        $region45: #{tpu_custom_call.1} parent=31 // pred_check
          %p296 = pneg %p295
        $region46: #{tpu_custom_call.1} parent=31 // pred_check_branch
          %298 = sbr.rel (%p296) target = $region48
        $region47: #{tpu_custom_call.1} parent=31 // pred_region
          %299 = vst [vmem:[%s289] sm:$0xff] 0.0
          %300 = vst [vmem:[%s289 + $0x8] sm:$0xff] 0.0
          %301 = vst [vmem:[%s289 + $0x10] sm:$0xff] 0.0
          %302 = vst [vmem:[%s289 + $0x18] sm:$0xff] 0.0
          %303 = vst [vmem:[%s289 + $0x20] sm:$0xff] 0.0
          %304 = vst [vmem:[%s289 + $0x28] sm:$0xff] 0.0
          %305 = vst [vmem:[%s289 + $0x30] sm:$0xff] 0.0
          %306 = vst [vmem:[%s289 + $0x38] sm:$0xff] 0.0
          %307 = vst [vmem:[%s289 + $0x40] sm:$0xff] 0.0
          %308 = vst [vmem:[%s289 + $0x48] sm:$0xff] 0.0
          %309 = vst [vmem:[%s289 + $0x50] sm:$0xff] 0.0
          %310 = vst [vmem:[%s289 + $0x58] sm:$0xff] 0.0
          %311 = vst [vmem:[%s289 + $0x60] sm:$0xff] 0.0
          %312 = vst [vmem:[%s289 + $0x68] sm:$0xff] 0.0
          %313 = vst [vmem:[%s289 + $0x70] sm:$0xff] 0.0
          %314 = vst [vmem:[%s289 + $0x78] sm:$0xff] 0.0
          %315 = vst [vmem:[%s289 + $0x80] sm:$0xff] 0.0
          %316 = vst [vmem:[%s289 + $0x88] sm:$0xff] 0.0
          %317 = vst [vmem:[%s289 + $0x90] sm:$0xff] 0.0
          %318 = vst [vmem:[%s289 + $0x98] sm:$0xff] 0.0
          %319 = vst [vmem:[%s289 + $0xa0] sm:$0xff] 0.0
          %320 = vst [vmem:[%s289 + $0xa8] sm:$0xff] 0.0
          %321 = vst [vmem:[%s289 + $0xb0] sm:$0xff] 0.0
          %322 = vst [vmem:[%s289 + $0xb8] sm:$0xff] 0.0
          %323 = vst [vmem:[%s289 + $0xc0] sm:$0xff] 0.0
          %324 = vst [vmem:[%s289 + $0xc8] sm:$0xff] 0.0
          %325 = vst [vmem:[%s289 + $0xd0] sm:$0xff] 0.0
          %326 = vst [vmem:[%s289 + $0xd8] sm:$0xff] 0.0
          %327 = vst [vmem:[%s289 + $0xe0] sm:$0xff] 0.0
          %328 = vst [vmem:[%s289 + $0xe8] sm:$0xff] 0.0
          %329 = vst [vmem:[%s289 + $0xf0] sm:$0xff] 0.0
          %330 = vst [vmem:[%s289 + $0xf8] sm:$0xff] 0.0
        $region48: #{tpu_custom_call.1} parent=31 // pred_fallthru
          _
        %v331 = vld [vmem:[%s289] sm:$0xff]
        %v332 = vld [vmem:[%s289 + $0x8] sm:$0xff]
        %v333 = vld [vmem:[%s289 + $0x10] sm:$0xff]
        %v334 = vld [vmem:[%s289 + $0x18] sm:$0xff]
        %v335 = vld [vmem:[%s289 + $0x20] sm:$0xff]
        %v336 = vld [vmem:[%s289 + $0x28] sm:$0xff]
        %v337 = vld [vmem:[%s289 + $0x30] sm:$0xff]
        %v338 = vld [vmem:[%s289 + $0x38] sm:$0xff]
        %v339 = vld [vmem:[%s289 + $0x40] sm:$0xff]
        %v340 = vld [vmem:[%s289 + $0x48] sm:$0xff]
        %v341 = vld [vmem:[%s289 + $0x50] sm:$0xff]
        %v342 = vld [vmem:[%s289 + $0x58] sm:$0xff]
        %v343 = vld [vmem:[%s289 + $0x60] sm:$0xff]
        %v344 = vld [vmem:[%s289 + $0x68] sm:$0xff]
        %v345 = vld [vmem:[%s289 + $0x70] sm:$0xff]
        %v346 = vld [vmem:[%s289 + $0x78] sm:$0xff]
        %v347 = vld [vmem:[%s289 + $0x80] sm:$0xff]
        %v348 = vld [vmem:[%s289 + $0x88] sm:$0xff]
        %v349 = vld [vmem:[%s289 + $0x90] sm:$0xff]
        %v350 = vld [vmem:[%s289 + $0x98] sm:$0xff]
        %v351 = vld [vmem:[%s289 + $0xa0] sm:$0xff]
        %v352 = vld [vmem:[%s289 + $0xa8] sm:$0xff]
        %v353 = vld [vmem:[%s289 + $0xb0] sm:$0xff]
        %v354 = vld [vmem:[%s289 + $0xb8] sm:$0xff]
        %v355 = vld [vmem:[%s289 + $0xc0] sm:$0xff]
        %v356 = vld [vmem:[%s289 + $0xc8] sm:$0xff]
        %v357 = vld [vmem:[%s289 + $0xd0] sm:$0xff]
        %v358 = vld [vmem:[%s289 + $0xd8] sm:$0xff]
        %v359 = vld [vmem:[%s289 + $0xe0] sm:$0xff]
        %v360 = vld [vmem:[%s289 + $0xe8] sm:$0xff]
        %v361 = vld [vmem:[%s289 + $0xf0] sm:$0xff]
        %v362 = vld [vmem:[%s289 + $0xf8] sm:$0xff]
        %v363 = vld [vmem:[%s241] sm:$0xff]
        %v364 = vld [vmem:[%s241 + $0x8] sm:$0xff]
        %v365 = vld [vmem:[%s241 + $0x10] sm:$0xff]
        %v366 = vld [vmem:[%s241 + $0x18] sm:$0xff]
        %v367 = vld [vmem:[%s241 + $0x20] sm:$0xff]
        %v368 = vld [vmem:[%s241 + $0x28] sm:$0xff]
        %v369 = vld [vmem:[%s241 + $0x30] sm:$0xff]
        %v370 = vld [vmem:[%s241 + $0x38] sm:$0xff]
        %v371 = vld [vmem:[%s241 + $0x40] sm:$0xff]
        %v372 = vld [vmem:[%s241 + $0x48] sm:$0xff]
        %v373 = vld [vmem:[%s241 + $0x50] sm:$0xff]
        %v374 = vld [vmem:[%s241 + $0x58] sm:$0xff]
        %v375 = vld [vmem:[%s241 + $0x60] sm:$0xff]
        %v376 = vld [vmem:[%s241 + $0x68] sm:$0xff]
        %v377 = vld [vmem:[%s241 + $0x70] sm:$0xff]
        %v378 = vld [vmem:[%s241 + $0x78] sm:$0xff]
        %v379 = vld [vmem:[%s241 + $0x80] sm:$0xff]
        %v380 = vld [vmem:[%s241 + $0x88] sm:$0xff]
        %v381 = vld [vmem:[%s241 + $0x90] sm:$0xff]
        %v382 = vld [vmem:[%s241 + $0x98] sm:$0xff]
        %v383 = vld [vmem:[%s241 + $0xa0] sm:$0xff]
        %v384 = vld [vmem:[%s241 + $0xa8] sm:$0xff]
        %v385 = vld [vmem:[%s241 + $0xb0] sm:$0xff]
        %v386 = vld [vmem:[%s241 + $0xb8] sm:$0xff]
        %v387 = vld [vmem:[%s241 + $0xc0] sm:$0xff]
        %v388 = vld [vmem:[%s241 + $0xc8] sm:$0xff]
        %v389 = vld [vmem:[%s241 + $0xd0] sm:$0xff]
        %v390 = vld [vmem:[%s241 + $0xd8] sm:$0xff]
        %v391 = vld [vmem:[%s241 + $0xe0] sm:$0xff]
        %v392 = vld [vmem:[%s241 + $0xe8] sm:$0xff]
        %v393 = vld [vmem:[%s241 + $0xf0] sm:$0xff]
        %v394 = vld [vmem:[%s241 + $0xf8] sm:$0xff]
        %v395 = vld [vmem:[%s241 + $0x100] sm:$0xff]
        %v396 = vld [vmem:[%s241 + $0x108] sm:$0xff]
        %v397 = vld [vmem:[%s241 + $0x110] sm:$0xff]
        %v398 = vld [vmem:[%s241 + $0x118] sm:$0xff]
        %v399 = vld [vmem:[%s241 + $0x120] sm:$0xff]
        %v400 = vld [vmem:[%s241 + $0x128] sm:$0xff]
        %v401 = vld [vmem:[%s241 + $0x130] sm:$0xff]
        %v402 = vld [vmem:[%s241 + $0x138] sm:$0xff]
        %v403 = vld [vmem:[%s241 + $0x140] sm:$0xff]
        %v404 = vld [vmem:[%s241 + $0x148] sm:$0xff]
        %v405 = vld [vmem:[%s241 + $0x150] sm:$0xff]
        %v406 = vld [vmem:[%s241 + $0x158] sm:$0xff]
        %v407 = vld [vmem:[%s241 + $0x160] sm:$0xff]
        %v408 = vld [vmem:[%s241 + $0x168] sm:$0xff]
        %v409 = vld [vmem:[%s241 + $0x170] sm:$0xff]
        %v410 = vld [vmem:[%s241 + $0x178] sm:$0xff]
        %v411 = vld [vmem:[%s241 + $0x180] sm:$0xff]
        %v412 = vld [vmem:[%s241 + $0x188] sm:$0xff]
        %v413 = vld [vmem:[%s241 + $0x190] sm:$0xff]
        %v414 = vld [vmem:[%s241 + $0x198] sm:$0xff]
        %v415 = vld [vmem:[%s241 + $0x1a0] sm:$0xff]
        %v416 = vld [vmem:[%s241 + $0x1a8] sm:$0xff]
        %v417 = vld [vmem:[%s241 + $0x1b0] sm:$0xff]
        %v418 = vld [vmem:[%s241 + $0x1b8] sm:$0xff]
        %v419 = vld [vmem:[%s241 + $0x1c0] sm:$0xff]
        %v420 = vld [vmem:[%s241 + $0x1c8] sm:$0xff]
        %v421 = vld [vmem:[%s241 + $0x1d0] sm:$0xff]
        %v422 = vld [vmem:[%s241 + $0x1d8] sm:$0xff]
        %v423 = vld [vmem:[%s241 + $0x1e0] sm:$0xff]
        %v424 = vld [vmem:[%s241 + $0x1e8] sm:$0xff]
        %v425 = vld [vmem:[%s241 + $0x1f0] sm:$0xff]
        %v426 = vld [vmem:[%s241 + $0x1f8] sm:$0xff]
        %v427 = vld [vmem:[%s241 + $0x200] sm:$0xff]
        %v428 = vld [vmem:[%s241 + $0x208] sm:$0xff]
        %v429 = vld [vmem:[%s241 + $0x210] sm:$0xff]
        %v430 = vld [vmem:[%s241 + $0x218] sm:$0xff]
        %v431 = vld [vmem:[%s241 + $0x220] sm:$0xff]
        %v432 = vld [vmem:[%s241 + $0x228] sm:$0xff]
        %v433 = vld [vmem:[%s241 + $0x230] sm:$0xff]
        %v434 = vld [vmem:[%s241 + $0x238] sm:$0xff]
        %v435 = vld [vmem:[%s241 + $0x240] sm:$0xff]
        %v436 = vld [vmem:[%s241 + $0x248] sm:$0xff]
        %v437 = vld [vmem:[%s241 + $0x250] sm:$0xff]
        %v438 = vld [vmem:[%s241 + $0x258] sm:$0xff]
        %v439 = vld [vmem:[%s241 + $0x260] sm:$0xff]
        %v440 = vld [vmem:[%s241 + $0x268] sm:$0xff]
        %v441 = vld [vmem:[%s241 + $0x270] sm:$0xff]
        %v442 = vld [vmem:[%s241 + $0x278] sm:$0xff]
        %v443 = vld [vmem:[%s241 + $0x280] sm:$0xff]
        %v444 = vld [vmem:[%s241 + $0x288] sm:$0xff]
        %v445 = vld [vmem:[%s241 + $0x290] sm:$0xff]
        %v446 = vld [vmem:[%s241 + $0x298] sm:$0xff]
        %v447 = vld [vmem:[%s241 + $0x2a0] sm:$0xff]
        %v448 = vld [vmem:[%s241 + $0x2a8] sm:$0xff]
        %v449 = vld [vmem:[%s241 + $0x2b0] sm:$0xff]
        %v450 = vld [vmem:[%s241 + $0x2b8] sm:$0xff]
        %v451 = vld [vmem:[%s241 + $0x2c0] sm:$0xff]
        %v452 = vld [vmem:[%s241 + $0x2c8] sm:$0xff]
        %v453 = vld [vmem:[%s241 + $0x2d0] sm:$0xff]
        %v454 = vld [vmem:[%s241 + $0x2d8] sm:$0xff]
        %v455 = vld [vmem:[%s241 + $0x2e0] sm:$0xff]
        %v456 = vld [vmem:[%s241 + $0x2e8] sm:$0xff]
        %v457 = vld [vmem:[%s241 + $0x2f0] sm:$0xff]
        %v458 = vld [vmem:[%s241 + $0x2f8] sm:$0xff]
        %v459 = vld [vmem:[%s241 + $0x300] sm:$0xff]
        %v460 = vld [vmem:[%s241 + $0x308] sm:$0xff]
        %v461 = vld [vmem:[%s241 + $0x310] sm:$0xff]
        %v462 = vld [vmem:[%s241 + $0x318] sm:$0xff]
        %v463 = vld [vmem:[%s241 + $0x320] sm:$0xff]
        %v464 = vld [vmem:[%s241 + $0x328] sm:$0xff]
        %v465 = vld [vmem:[%s241 + $0x330] sm:$0xff]
        %v466 = vld [vmem:[%s241 + $0x338] sm:$0xff]
        %v467 = vld [vmem:[%s241 + $0x340] sm:$0xff]
        %v468 = vld [vmem:[%s241 + $0x348] sm:$0xff]
        %v469 = vld [vmem:[%s241 + $0x350] sm:$0xff]
        %v470 = vld [vmem:[%s241 + $0x358] sm:$0xff]
        %v471 = vld [vmem:[%s241 + $0x360] sm:$0xff]
        %v472 = vld [vmem:[%s241 + $0x368] sm:$0xff]
        %v473 = vld [vmem:[%s241 + $0x370] sm:$0xff]
        %v474 = vld [vmem:[%s241 + $0x378] sm:$0xff]
        %v475 = vld [vmem:[%s241 + $0x380] sm:$0xff]
        %v476 = vld [vmem:[%s241 + $0x388] sm:$0xff]
        %v477 = vld [vmem:[%s241 + $0x390] sm:$0xff]
        %v478 = vld [vmem:[%s241 + $0x398] sm:$0xff]
        %v479 = vld [vmem:[%s241 + $0x3a0] sm:$0xff]
        %v480 = vld [vmem:[%s241 + $0x3a8] sm:$0xff]
        %v481 = vld [vmem:[%s241 + $0x3b0] sm:$0xff]
        %v482 = vld [vmem:[%s241 + $0x3b8] sm:$0xff]
        %v483 = vld [vmem:[%s241 + $0x3c0] sm:$0xff]
        %v484 = vld [vmem:[%s241 + $0x3c8] sm:$0xff]
        %v485 = vld [vmem:[%s241 + $0x3d0] sm:$0xff]
        %v486 = vld [vmem:[%s241 + $0x3d8] sm:$0xff]
        %v487 = vld [vmem:[%s241 + $0x3e0] sm:$0xff]
        %v488 = vld [vmem:[%s241 + $0x3e8] sm:$0xff]
        %v489 = vld [vmem:[%s241 + $0x3f0] sm:$0xff]
        %v490 = vld [vmem:[%s241 + $0x3f8] sm:$0xff]
        %v491 = vld [vmem:[%s241 + $0x400] sm:$0xff]
        %v492 = vld [vmem:[%s241 + $0x408] sm:$0xff]
        %v493 = vld [vmem:[%s241 + $0x410] sm:$0xff]
        %v494 = vld [vmem:[%s241 + $0x418] sm:$0xff]
        %v495 = vld [vmem:[%s241 + $0x420] sm:$0xff]
        %v496 = vld [vmem:[%s241 + $0x428] sm:$0xff]
        %v497 = vld [vmem:[%s241 + $0x430] sm:$0xff]
        %v498 = vld [vmem:[%s241 + $0x438] sm:$0xff]
        %v499 = vld [vmem:[%s241 + $0x440] sm:$0xff]
        %v500 = vld [vmem:[%s241 + $0x448] sm:$0xff]
        %v501 = vld [vmem:[%s241 + $0x450] sm:$0xff]
        %v502 = vld [vmem:[%s241 + $0x458] sm:$0xff]
        %v503 = vld [vmem:[%s241 + $0x460] sm:$0xff]
        %v504 = vld [vmem:[%s241 + $0x468] sm:$0xff]
        %v505 = vld [vmem:[%s241 + $0x470] sm:$0xff]
        %v506 = vld [vmem:[%s241 + $0x478] sm:$0xff]
        %v507 = vld [vmem:[%s241 + $0x480] sm:$0xff]
        %v508 = vld [vmem:[%s241 + $0x488] sm:$0xff]
        %v509 = vld [vmem:[%s241 + $0x490] sm:$0xff]
        %v510 = vld [vmem:[%s241 + $0x498] sm:$0xff]
        %v511 = vld [vmem:[%s241 + $0x4a0] sm:$0xff]
        %v512 = vld [vmem:[%s241 + $0x4a8] sm:$0xff]
        %v513 = vld [vmem:[%s241 + $0x4b0] sm:$0xff]
        %v514 = vld [vmem:[%s241 + $0x4b8] sm:$0xff]
        %v515 = vld [vmem:[%s241 + $0x4c0] sm:$0xff]
        %v516 = vld [vmem:[%s241 + $0x4c8] sm:$0xff]
        %v517 = vld [vmem:[%s241 + $0x4d0] sm:$0xff]
        %v518 = vld [vmem:[%s241 + $0x4d8] sm:$0xff]
        %v519 = vld [vmem:[%s241 + $0x4e0] sm:$0xff]
        %v520 = vld [vmem:[%s241 + $0x4e8] sm:$0xff]
        %v521 = vld [vmem:[%s241 + $0x4f0] sm:$0xff]
        %v522 = vld [vmem:[%s241 + $0x4f8] sm:$0xff]
        %v523 = vld [vmem:[%s241 + $0x500] sm:$0xff]
        %v524 = vld [vmem:[%s241 + $0x508] sm:$0xff]
        %v525 = vld [vmem:[%s241 + $0x510] sm:$0xff]
        %v526 = vld [vmem:[%s241 + $0x518] sm:$0xff]
        %v527 = vld [vmem:[%s241 + $0x520] sm:$0xff]
        %v528 = vld [vmem:[%s241 + $0x528] sm:$0xff]
        %v529 = vld [vmem:[%s241 + $0x530] sm:$0xff]
        %v530 = vld [vmem:[%s241 + $0x538] sm:$0xff]
        %v531 = vld [vmem:[%s241 + $0x540] sm:$0xff]
        %v532 = vld [vmem:[%s241 + $0x548] sm:$0xff]
        %v533 = vld [vmem:[%s241 + $0x550] sm:$0xff]
        %v534 = vld [vmem:[%s241 + $0x558] sm:$0xff]
        %v535 = vld [vmem:[%s241 + $0x560] sm:$0xff]
        %v536 = vld [vmem:[%s241 + $0x568] sm:$0xff]
        %v537 = vld [vmem:[%s241 + $0x570] sm:$0xff]
        %v538 = vld [vmem:[%s241 + $0x578] sm:$0xff]
        %v539 = vld [vmem:[%s241 + $0x580] sm:$0xff]
        %v540 = vld [vmem:[%s241 + $0x588] sm:$0xff]
        %v541 = vld [vmem:[%s241 + $0x590] sm:$0xff]
        %v542 = vld [vmem:[%s241 + $0x598] sm:$0xff]
        %v543 = vld [vmem:[%s241 + $0x5a0] sm:$0xff]
        %v544 = vld [vmem:[%s241 + $0x5a8] sm:$0xff]
        %v545 = vld [vmem:[%s241 + $0x5b0] sm:$0xff]
        %v546 = vld [vmem:[%s241 + $0x5b8] sm:$0xff]
        %v547 = vld [vmem:[%s241 + $0x5c0] sm:$0xff]
        %v548 = vld [vmem:[%s241 + $0x5c8] sm:$0xff]
        %v549 = vld [vmem:[%s241 + $0x5d0] sm:$0xff]
        %v550 = vld [vmem:[%s241 + $0x5d8] sm:$0xff]
        %v551 = vld [vmem:[%s241 + $0x5e0] sm:$0xff]
        %v552 = vld [vmem:[%s241 + $0x5e8] sm:$0xff]
        %v553 = vld [vmem:[%s241 + $0x5f0] sm:$0xff]
        %v554 = vld [vmem:[%s241 + $0x5f8] sm:$0xff]
        %v555 = vld [vmem:[%s241 + $0x600] sm:$0xff]
        %v556 = vld [vmem:[%s241 + $0x608] sm:$0xff]
        %v557 = vld [vmem:[%s241 + $0x610] sm:$0xff]
        %v558 = vld [vmem:[%s241 + $0x618] sm:$0xff]
        %v559 = vld [vmem:[%s241 + $0x620] sm:$0xff]
        %v560 = vld [vmem:[%s241 + $0x628] sm:$0xff]
        %v561 = vld [vmem:[%s241 + $0x630] sm:$0xff]
        %v562 = vld [vmem:[%s241 + $0x638] sm:$0xff]
        %v563 = vld [vmem:[%s241 + $0x640] sm:$0xff]
        %v564 = vld [vmem:[%s241 + $0x648] sm:$0xff]
        %v565 = vld [vmem:[%s241 + $0x650] sm:$0xff]
        %v566 = vld [vmem:[%s241 + $0x658] sm:$0xff]
        %v567 = vld [vmem:[%s241 + $0x660] sm:$0xff]
        %v568 = vld [vmem:[%s241 + $0x668] sm:$0xff]
        %v569 = vld [vmem:[%s241 + $0x670] sm:$0xff]
        %v570 = vld [vmem:[%s241 + $0x678] sm:$0xff]
        %v571 = vld [vmem:[%s241 + $0x680] sm:$0xff]
        %v572 = vld [vmem:[%s241 + $0x688] sm:$0xff]
        %v573 = vld [vmem:[%s241 + $0x690] sm:$0xff]
        %v574 = vld [vmem:[%s241 + $0x698] sm:$0xff]
        %v575 = vld [vmem:[%s241 + $0x6a0] sm:$0xff]
        %v576 = vld [vmem:[%s241 + $0x6a8] sm:$0xff]
        %v577 = vld [vmem:[%s241 + $0x6b0] sm:$0xff]
        %v578 = vld [vmem:[%s241 + $0x6b8] sm:$0xff]
        %v579 = vld [vmem:[%s241 + $0x6c0] sm:$0xff]
        %v580 = vld [vmem:[%s241 + $0x6c8] sm:$0xff]
        %v581 = vld [vmem:[%s241 + $0x6d0] sm:$0xff]
        %v582 = vld [vmem:[%s241 + $0x6d8] sm:$0xff]
        %v583 = vld [vmem:[%s241 + $0x6e0] sm:$0xff]
        %v584 = vld [vmem:[%s241 + $0x6e8] sm:$0xff]
        %v585 = vld [vmem:[%s241 + $0x6f0] sm:$0xff]
        %v586 = vld [vmem:[%s241 + $0x6f8] sm:$0xff]
        %v587 = vld [vmem:[%s241 + $0x700] sm:$0xff]
        %v588 = vld [vmem:[%s241 + $0x708] sm:$0xff]
        %v589 = vld [vmem:[%s241 + $0x710] sm:$0xff]
        %v590 = vld [vmem:[%s241 + $0x718] sm:$0xff]
        %v591 = vld [vmem:[%s241 + $0x720] sm:$0xff]
        %v592 = vld [vmem:[%s241 + $0x728] sm:$0xff]
        %v593 = vld [vmem:[%s241 + $0x730] sm:$0xff]
        %v594 = vld [vmem:[%s241 + $0x738] sm:$0xff]
        %v595 = vld [vmem:[%s241 + $0x740] sm:$0xff]
        %v596 = vld [vmem:[%s241 + $0x748] sm:$0xff]
        %v597 = vld [vmem:[%s241 + $0x750] sm:$0xff]
        %v598 = vld [vmem:[%s241 + $0x758] sm:$0xff]
        %v599 = vld [vmem:[%s241 + $0x760] sm:$0xff]
        %v600 = vld [vmem:[%s241 + $0x768] sm:$0xff]
        %v601 = vld [vmem:[%s241 + $0x770] sm:$0xff]
        %v602 = vld [vmem:[%s241 + $0x778] sm:$0xff]
        %v603 = vld [vmem:[%s241 + $0x780] sm:$0xff]
        %v604 = vld [vmem:[%s241 + $0x788] sm:$0xff]
        %v605 = vld [vmem:[%s241 + $0x790] sm:$0xff]
        %v606 = vld [vmem:[%s241 + $0x798] sm:$0xff]
        %v607 = vld [vmem:[%s241 + $0x7a0] sm:$0xff]
        %v608 = vld [vmem:[%s241 + $0x7a8] sm:$0xff]
        %v609 = vld [vmem:[%s241 + $0x7b0] sm:$0xff]
        %v610 = vld [vmem:[%s241 + $0x7b8] sm:$0xff]
        %v611 = vld [vmem:[%s241 + $0x7c0] sm:$0xff]
        %v612 = vld [vmem:[%s241 + $0x7c8] sm:$0xff]
        %v613 = vld [vmem:[%s241 + $0x7d0] sm:$0xff]
        %v614 = vld [vmem:[%s241 + $0x7d8] sm:$0xff]
        %v615 = vld [vmem:[%s241 + $0x7e0] sm:$0xff]
        %v616 = vld [vmem:[%s241 + $0x7e8] sm:$0xff]
        %v617 = vld [vmem:[%s241 + $0x7f0] sm:$0xff]
        %v618 = vld [vmem:[%s241 + $0x7f8] sm:$0xff]
        %v619 = vpack.c.bf16 %v371, %v363
        %v620 = vpack.c.bf16 %v372, %v364
        %v621 = vpack.c.bf16 %v373, %v365
        %v622 = vpack.c.bf16 %v374, %v366
        %v623 = vpack.c.bf16 %v375, %v367
        %v624 = vpack.c.bf16 %v376, %v368
        %v625 = vpack.c.bf16 %v377, %v369
        %v626 = vpack.c.bf16 %v378, %v370
        %v627 = vpack.c.bf16 %v387, %v379
        %v628 = vpack.c.bf16 %v388, %v380
        %v629 = vpack.c.bf16 %v389, %v381
        %v630 = vpack.c.bf16 %v390, %v382
        %v631 = vpack.c.bf16 %v391, %v383
        %v632 = vpack.c.bf16 %v392, %v384
        %v633 = vpack.c.bf16 %v393, %v385
        %v634 = vpack.c.bf16 %v394, %v386
        %v635 = vpack.c.bf16 %v403, %v395
        %v636 = vpack.c.bf16 %v404, %v396
        %v637 = vpack.c.bf16 %v405, %v397
        %v638 = vpack.c.bf16 %v406, %v398
        %v639 = vpack.c.bf16 %v407, %v399
        %v640 = vpack.c.bf16 %v408, %v400
        %v641 = vpack.c.bf16 %v409, %v401
        %v642 = vpack.c.bf16 %v410, %v402
        %v643 = vpack.c.bf16 %v419, %v411
        %v644 = vpack.c.bf16 %v420, %v412
        %v645 = vpack.c.bf16 %v421, %v413
        %v646 = vpack.c.bf16 %v422, %v414
        %v647 = vpack.c.bf16 %v423, %v415
        %v648 = vpack.c.bf16 %v424, %v416
        %v649 = vpack.c.bf16 %v425, %v417
        %v650 = vpack.c.bf16 %v426, %v418
        %v651 = vpack.c.bf16 %v435, %v427
        %v652 = vpack.c.bf16 %v436, %v428
        %v653 = vpack.c.bf16 %v437, %v429
        %v654 = vpack.c.bf16 %v438, %v430
        %v655 = vpack.c.bf16 %v439, %v431
        %v656 = vpack.c.bf16 %v440, %v432
        %v657 = vpack.c.bf16 %v441, %v433
        %v658 = vpack.c.bf16 %v442, %v434
        %v659 = vpack.c.bf16 %v451, %v443
        %v660 = vpack.c.bf16 %v452, %v444
        %v661 = vpack.c.bf16 %v453, %v445
        %v662 = vpack.c.bf16 %v454, %v446
        %v663 = vpack.c.bf16 %v455, %v447
        %v664 = vpack.c.bf16 %v456, %v448
        %v665 = vpack.c.bf16 %v457, %v449
        %v666 = vpack.c.bf16 %v458, %v450
        %v667 = vpack.c.bf16 %v467, %v459
        %v668 = vpack.c.bf16 %v468, %v460
        %v669 = vpack.c.bf16 %v469, %v461
        %v670 = vpack.c.bf16 %v470, %v462
        %v671 = vpack.c.bf16 %v471, %v463
        %v672 = vpack.c.bf16 %v472, %v464
        %v673 = vpack.c.bf16 %v473, %v465
        %v674 = vpack.c.bf16 %v474, %v466
        %v675 = vpack.c.bf16 %v483, %v475
        %v676 = vpack.c.bf16 %v484, %v476
        %v677 = vpack.c.bf16 %v485, %v477
        %v678 = vpack.c.bf16 %v486, %v478
        %v679 = vpack.c.bf16 %v487, %v479
        %v680 = vpack.c.bf16 %v488, %v480
        %v681 = vpack.c.bf16 %v489, %v481
        %v682 = vpack.c.bf16 %v490, %v482
        %v683 = vpack.c.bf16 %v499, %v491
        %v684 = vpack.c.bf16 %v500, %v492
        %v685 = vpack.c.bf16 %v501, %v493
        %v686 = vpack.c.bf16 %v502, %v494
        %v687 = vpack.c.bf16 %v503, %v495
        %v688 = vpack.c.bf16 %v504, %v496
        %v689 = vpack.c.bf16 %v505, %v497
        %v690 = vpack.c.bf16 %v506, %v498
        %v691 = vpack.c.bf16 %v515, %v507
        %v692 = vpack.c.bf16 %v516, %v508
        %v693 = vpack.c.bf16 %v517, %v509
        %v694 = vpack.c.bf16 %v518, %v510
        %v695 = vpack.c.bf16 %v519, %v511
        %v696 = vpack.c.bf16 %v520, %v512
        %v697 = vpack.c.bf16 %v521, %v513
        %v698 = vpack.c.bf16 %v522, %v514
        %v699 = vpack.c.bf16 %v531, %v523
        %v700 = vpack.c.bf16 %v532, %v524
        %v701 = vpack.c.bf16 %v533, %v525
        %v702 = vpack.c.bf16 %v534, %v526
        %v703 = vpack.c.bf16 %v535, %v527
        %v704 = vpack.c.bf16 %v536, %v528
        %v705 = vpack.c.bf16 %v537, %v529
        %v706 = vpack.c.bf16 %v538, %v530
        %v707 = vpack.c.bf16 %v547, %v539
        %v708 = vpack.c.bf16 %v548, %v540
        %v709 = vpack.c.bf16 %v549, %v541
        %v710 = vpack.c.bf16 %v550, %v542
        %v711 = vpack.c.bf16 %v551, %v543
        %v712 = vpack.c.bf16 %v552, %v544
        %v713 = vpack.c.bf16 %v553, %v545
        %v714 = vpack.c.bf16 %v554, %v546
        %v715 = vpack.c.bf16 %v563, %v555
        %v716 = vpack.c.bf16 %v564, %v556
        %v717 = vpack.c.bf16 %v565, %v557
        %v718 = vpack.c.bf16 %v566, %v558
        %v719 = vpack.c.bf16 %v567, %v559
        %v720 = vpack.c.bf16 %v568, %v560
        %v721 = vpack.c.bf16 %v569, %v561
        %v722 = vpack.c.bf16 %v570, %v562
        %v723 = vpack.c.bf16 %v579, %v571
        %v724 = vpack.c.bf16 %v580, %v572
        %v725 = vpack.c.bf16 %v581, %v573
        %v726 = vpack.c.bf16 %v582, %v574
        %v727 = vpack.c.bf16 %v583, %v575
        %v728 = vpack.c.bf16 %v584, %v576
        %v729 = vpack.c.bf16 %v585, %v577
        %v730 = vpack.c.bf16 %v586, %v578
        %v731 = vpack.c.bf16 %v595, %v587
        %v732 = vpack.c.bf16 %v596, %v588
        %v733 = vpack.c.bf16 %v597, %v589
        %v734 = vpack.c.bf16 %v598, %v590
        %v735 = vpack.c.bf16 %v599, %v591
        %v736 = vpack.c.bf16 %v600, %v592
        %v737 = vpack.c.bf16 %v601, %v593
        %v738 = vpack.c.bf16 %v602, %v594
        %v739 = vpack.c.bf16 %v611, %v603
        %v740 = vpack.c.bf16 %v612, %v604
        %v741 = vpack.c.bf16 %v613, %v605
        %v742 = vpack.c.bf16 %v614, %v606
        %v743 = vpack.c.bf16 %v615, %v607
        %v744 = vpack.c.bf16 %v616, %v608
        %v745 = vpack.c.bf16 %v617, %v609
        %v746 = vpack.c.bf16 %v618, %v610
        %v747 = vld [vmem:[%s250] sm:$0xf]
        %v748 = vld [vmem:[%s250 + $0x4] sm:$0xf]
        %v749 = vld [vmem:[%s250 + $0x8] sm:$0xf]
        %v750 = vld [vmem:[%s250 + $0xc] sm:$0xf]
        %v751 = vld [vmem:[%s250 + $0x10] sm:$0xf]
        %v752 = vld [vmem:[%s250 + $0x14] sm:$0xf]
        %v753 = vld [vmem:[%s250 + $0x18] sm:$0xf]
        %v754 = vld [vmem:[%s250 + $0x1c] sm:$0xf]
        %v755 = vld [vmem:[%s250 + $0x20] sm:$0xf]
        %v756 = vld [vmem:[%s250 + $0x24] sm:$0xf]
        %v757 = vld [vmem:[%s250 + $0x28] sm:$0xf]
        %v758 = vld [vmem:[%s250 + $0x2c] sm:$0xf]
        %v759 = vld [vmem:[%s250 + $0x30] sm:$0xf]
        %v760 = vld [vmem:[%s250 + $0x34] sm:$0xf]
        %v761 = vld [vmem:[%s250 + $0x38] sm:$0xf]
        %v762 = vld [vmem:[%s250 + $0x3c] sm:$0xf]
        %v763 = vld [vmem:[%s250 + $0x40] sm:$0xf]
        %v764 = vld [vmem:[%s250 + $0x44] sm:$0xf]
        %v765 = vld [vmem:[%s250 + $0x48] sm:$0xf]
        %v766 = vld [vmem:[%s250 + $0x4c] sm:$0xf]
        %v767 = vld [vmem:[%s250 + $0x50] sm:$0xf]
        %v768 = vld [vmem:[%s250 + $0x54] sm:$0xf]
        %v769 = vld [vmem:[%s250 + $0x58] sm:$0xf]
        %v770 = vld [vmem:[%s250 + $0x5c] sm:$0xf]
        %v771 = vld [vmem:[%s250 + $0x60] sm:$0xf]
        %v772 = vld [vmem:[%s250 + $0x64] sm:$0xf]
        %v773 = vld [vmem:[%s250 + $0x68] sm:$0xf]
        %v774 = vld [vmem:[%s250 + $0x6c] sm:$0xf]
        %v775 = vld [vmem:[%s250 + $0x70] sm:$0xf]
        %v776 = vld [vmem:[%s250 + $0x74] sm:$0xf]
        %v777 = vld [vmem:[%s250 + $0x78] sm:$0xf]
        %v778 = vld [vmem:[%s250 + $0x7c] sm:$0xf]
        %v779 = vld [vmem:[%s250 + $0x80] sm:$0xf]
        %v780 = vld [vmem:[%s250 + $0x84] sm:$0xf]
        %v781 = vld [vmem:[%s250 + $0x88] sm:$0xf]
        %v782 = vld [vmem:[%s250 + $0x8c] sm:$0xf]
        %v783 = vld [vmem:[%s250 + $0x90] sm:$0xf]
        %v784 = vld [vmem:[%s250 + $0x94] sm:$0xf]
        %v785 = vld [vmem:[%s250 + $0x98] sm:$0xf]
        %v786 = vld [vmem:[%s250 + $0x9c] sm:$0xf]
        %v787 = vld [vmem:[%s250 + $0xa0] sm:$0xf]
        %v788 = vld [vmem:[%s250 + $0xa4] sm:$0xf]
        %v789 = vld [vmem:[%s250 + $0xa8] sm:$0xf]
        %v790 = vld [vmem:[%s250 + $0xac] sm:$0xf]
        %v791 = vld [vmem:[%s250 + $0xb0] sm:$0xf]
        %v792 = vld [vmem:[%s250 + $0xb4] sm:$0xf]
        %v793 = vld [vmem:[%s250 + $0xb8] sm:$0xf]
        %v794 = vld [vmem:[%s250 + $0xbc] sm:$0xf]
        %v795 = vld [vmem:[%s250 + $0xc0] sm:$0xf]
        %v796 = vld [vmem:[%s250 + $0xc4] sm:$0xf]
        %v797 = vld [vmem:[%s250 + $0xc8] sm:$0xf]
        %v798 = vld [vmem:[%s250 + $0xcc] sm:$0xf]
        %v799 = vld [vmem:[%s250 + $0xd0] sm:$0xf]
        %v800 = vld [vmem:[%s250 + $0xd4] sm:$0xf]
        %v801 = vld [vmem:[%s250 + $0xd8] sm:$0xf]
        %v802 = vld [vmem:[%s250 + $0xdc] sm:$0xf]
        %v803 = vld [vmem:[%s250 + $0xe0] sm:$0xf]
        %v804 = vld [vmem:[%s250 + $0xe4] sm:$0xf]
        %v805 = vld [vmem:[%s250 + $0xe8] sm:$0xf]
        %v806 = vld [vmem:[%s250 + $0xec] sm:$0xf]
        %v807 = vld [vmem:[%s250 + $0xf0] sm:$0xf]
        %v808 = vld [vmem:[%s250 + $0xf4] sm:$0xf]
        %v809 = vld [vmem:[%s250 + $0xf8] sm:$0xf]
        %v810 = vld [vmem:[%s250 + $0xfc] sm:$0xf]
        %v811 = vld [vmem:[%s250 + $0x100] sm:$0xf]
        %v812 = vld [vmem:[%s250 + $0x104] sm:$0xf]
        %v813 = vld [vmem:[%s250 + $0x108] sm:$0xf]
        %v814 = vld [vmem:[%s250 + $0x10c] sm:$0xf]
        %v815 = vld [vmem:[%s250 + $0x110] sm:$0xf]
        %v816 = vld [vmem:[%s250 + $0x114] sm:$0xf]
        %v817 = vld [vmem:[%s250 + $0x118] sm:$0xf]
        %v818 = vld [vmem:[%s250 + $0x11c] sm:$0xf]
        %v819 = vld [vmem:[%s250 + $0x120] sm:$0xf]
        %v820 = vld [vmem:[%s250 + $0x124] sm:$0xf]
        %v821 = vld [vmem:[%s250 + $0x128] sm:$0xf]
        %v822 = vld [vmem:[%s250 + $0x12c] sm:$0xf]
        %v823 = vld [vmem:[%s250 + $0x130] sm:$0xf]
        %v824 = vld [vmem:[%s250 + $0x134] sm:$0xf]
        %v825 = vld [vmem:[%s250 + $0x138] sm:$0xf]
        %v826 = vld [vmem:[%s250 + $0x13c] sm:$0xf]
        %v827 = vld [vmem:[%s250 + $0x140] sm:$0xf]
        %v828 = vld [vmem:[%s250 + $0x144] sm:$0xf]
        %v829 = vld [vmem:[%s250 + $0x148] sm:$0xf]
        %v830 = vld [vmem:[%s250 + $0x14c] sm:$0xf]
        %v831 = vld [vmem:[%s250 + $0x150] sm:$0xf]
        %v832 = vld [vmem:[%s250 + $0x154] sm:$0xf]
        %v833 = vld [vmem:[%s250 + $0x158] sm:$0xf]
        %v834 = vld [vmem:[%s250 + $0x15c] sm:$0xf]
        %v835 = vld [vmem:[%s250 + $0x160] sm:$0xf]
        %v836 = vld [vmem:[%s250 + $0x164] sm:$0xf]
        %v837 = vld [vmem:[%s250 + $0x168] sm:$0xf]
        %v838 = vld [vmem:[%s250 + $0x16c] sm:$0xf]
        %v839 = vld [vmem:[%s250 + $0x170] sm:$0xf]
        %v840 = vld [vmem:[%s250 + $0x174] sm:$0xf]
        %v841 = vld [vmem:[%s250 + $0x178] sm:$0xf]
        %v842 = vld [vmem:[%s250 + $0x17c] sm:$0xf]
        %v843 = vld [vmem:[%s250 + $0x180] sm:$0xf]
        %v844 = vld [vmem:[%s250 + $0x184] sm:$0xf]
        %v845 = vld [vmem:[%s250 + $0x188] sm:$0xf]
        %v846 = vld [vmem:[%s250 + $0x18c] sm:$0xf]
        %v847 = vld [vmem:[%s250 + $0x190] sm:$0xf]
        %v848 = vld [vmem:[%s250 + $0x194] sm:$0xf]
        %v849 = vld [vmem:[%s250 + $0x198] sm:$0xf]
        %v850 = vld [vmem:[%s250 + $0x19c] sm:$0xf]
        %v851 = vld [vmem:[%s250 + $0x1a0] sm:$0xf]
        %v852 = vld [vmem:[%s250 + $0x1a4] sm:$0xf]
        %v853 = vld [vmem:[%s250 + $0x1a8] sm:$0xf]
        %v854 = vld [vmem:[%s250 + $0x1ac] sm:$0xf]
        %v855 = vld [vmem:[%s250 + $0x1b0] sm:$0xf]
        %v856 = vld [vmem:[%s250 + $0x1b4] sm:$0xf]
        %v857 = vld [vmem:[%s250 + $0x1b8] sm:$0xf]
        %v858 = vld [vmem:[%s250 + $0x1bc] sm:$0xf]
        %v859 = vld [vmem:[%s250 + $0x1c0] sm:$0xf]
        %v860 = vld [vmem:[%s250 + $0x1c4] sm:$0xf]
        %v861 = vld [vmem:[%s250 + $0x1c8] sm:$0xf]
        %v862 = vld [vmem:[%s250 + $0x1cc] sm:$0xf]
        %v863 = vld [vmem:[%s250 + $0x1d0] sm:$0xf]
        %v864 = vld [vmem:[%s250 + $0x1d4] sm:$0xf]
        %v865 = vld [vmem:[%s250 + $0x1d8] sm:$0xf]
        %v866 = vld [vmem:[%s250 + $0x1dc] sm:$0xf]
        %v867 = vld [vmem:[%s250 + $0x1e0] sm:$0xf]
        %v868 = vld [vmem:[%s250 + $0x1e4] sm:$0xf]
        %v869 = vld [vmem:[%s250 + $0x1e8] sm:$0xf]
        %v870 = vld [vmem:[%s250 + $0x1ec] sm:$0xf]
        %v871 = vld [vmem:[%s250 + $0x1f0] sm:$0xf]
        %v872 = vld [vmem:[%s250 + $0x1f4] sm:$0xf]
        %v873 = vld [vmem:[%s250 + $0x1f8] sm:$0xf]
        %v874 = vld [vmem:[%s250 + $0x1fc] sm:$0xf]
        %v1003 = vunpack.c.l.b16 %v747
        %v1004 = vunpack.c.l.b16 %v748
        %v1005 = vunpack.c.l.b16 %v749
        %v1006 = vunpack.c.l.b16 %v750
        %v1007 = vunpack.c.l.b16 %v751
        %v1008 = vunpack.c.l.b16 %v752
        %v1009 = vunpack.c.l.b16 %v753
        %v1010 = vunpack.c.l.b16 %v754
        %v1011 = vunpack.c.l.b16 %v755
        %v1012 = vunpack.c.l.b16 %v756
        %v1013 = vunpack.c.l.b16 %v757
        %v1014 = vunpack.c.l.b16 %v758
        %v1015 = vunpack.c.l.b16 %v759
        %v1016 = vunpack.c.l.b16 %v760
        %v1017 = vunpack.c.l.b16 %v761
        %v1018 = vunpack.c.l.b16 %v762
        %v1019 = vunpack.c.l.b16 %v763
        %v1020 = vunpack.c.l.b16 %v764
        %v1021 = vunpack.c.l.b16 %v765
        %v1022 = vunpack.c.l.b16 %v766
        %v1023 = vunpack.c.l.b16 %v767
        %v1024 = vunpack.c.l.b16 %v768
        %v1025 = vunpack.c.l.b16 %v769
        %v1026 = vunpack.c.l.b16 %v770
        %v1027 = vunpack.c.l.b16 %v771
        %v1028 = vunpack.c.l.b16 %v772
        %v1029 = vunpack.c.l.b16 %v773
        %v1030 = vunpack.c.l.b16 %v774
        %v1031 = vunpack.c.l.b16 %v775
        %v1032 = vunpack.c.l.b16 %v776
        %v1033 = vunpack.c.l.b16 %v777
        %v1034 = vunpack.c.l.b16 %v778
        %v1035 = vunpack.c.l.b16 %v779
        %v1036 = vunpack.c.l.b16 %v780
        %v1037 = vunpack.c.l.b16 %v781
        %v1038 = vunpack.c.l.b16 %v782
        %v1039 = vunpack.c.l.b16 %v783
        %v1040 = vunpack.c.l.b16 %v784
        %v1041 = vunpack.c.l.b16 %v785
        %v1042 = vunpack.c.l.b16 %v786
        %v1043 = vunpack.c.l.b16 %v787
        %v1044 = vunpack.c.l.b16 %v788
        %v1045 = vunpack.c.l.b16 %v789
        %v1046 = vunpack.c.l.b16 %v790
        %v1047 = vunpack.c.l.b16 %v791
        %v1048 = vunpack.c.l.b16 %v792
        %v1049 = vunpack.c.l.b16 %v793
        %v1050 = vunpack.c.l.b16 %v794
        %v1051 = vunpack.c.l.b16 %v795
        %v1052 = vunpack.c.l.b16 %v796
        %v1053 = vunpack.c.l.b16 %v797
        %v1054 = vunpack.c.l.b16 %v798
        %v1055 = vunpack.c.l.b16 %v799
        %v1056 = vunpack.c.l.b16 %v800
        %v1057 = vunpack.c.l.b16 %v801
        %v1058 = vunpack.c.l.b16 %v802
        %v1059 = vunpack.c.l.b16 %v803
        %v1060 = vunpack.c.l.b16 %v804
        %v1061 = vunpack.c.l.b16 %v805
        %v1062 = vunpack.c.l.b16 %v806
        %v1063 = vunpack.c.l.b16 %v807
        %v1064 = vunpack.c.l.b16 %v808
        %v1065 = vunpack.c.l.b16 %v809
        %v1066 = vunpack.c.l.b16 %v810
        %v1067 = vunpack.c.l.b16 %v811
        %v1068 = vunpack.c.l.b16 %v812
        %v1069 = vunpack.c.l.b16 %v813
        %v1070 = vunpack.c.l.b16 %v814
        %v1071 = vunpack.c.l.b16 %v815
        %v1072 = vunpack.c.l.b16 %v816
        %v1073 = vunpack.c.l.b16 %v817
        %v1074 = vunpack.c.l.b16 %v818
        %v1075 = vunpack.c.l.b16 %v819
        %v1076 = vunpack.c.l.b16 %v820
        %v1077 = vunpack.c.l.b16 %v821
        %v1078 = vunpack.c.l.b16 %v822
        %v1079 = vunpack.c.l.b16 %v823
        %v1080 = vunpack.c.l.b16 %v824
        %v1081 = vunpack.c.l.b16 %v825
        %v1082 = vunpack.c.l.b16 %v826
        %v1083 = vunpack.c.l.b16 %v827
        %v1084 = vunpack.c.l.b16 %v828
        %v1085 = vunpack.c.l.b16 %v829
        %v1086 = vunpack.c.l.b16 %v830
        %v1087 = vunpack.c.l.b16 %v831
        %v1088 = vunpack.c.l.b16 %v832
        %v1089 = vunpack.c.l.b16 %v833
        %v1090 = vunpack.c.l.b16 %v834
        %v1091 = vunpack.c.l.b16 %v835
        %v1092 = vunpack.c.l.b16 %v836
        %v1093 = vunpack.c.l.b16 %v837
        %v1094 = vunpack.c.l.b16 %v838
        %v1095 = vunpack.c.l.b16 %v839
        %v1096 = vunpack.c.l.b16 %v840
        %v1097 = vunpack.c.l.b16 %v841
        %v1098 = vunpack.c.l.b16 %v842
        %v1099 = vunpack.c.l.b16 %v843
        %v1100 = vunpack.c.l.b16 %v844
        %v1101 = vunpack.c.l.b16 %v845
        %v1102 = vunpack.c.l.b16 %v846
        %v1103 = vunpack.c.l.b16 %v847
        %v1104 = vunpack.c.l.b16 %v848
        %v1105 = vunpack.c.l.b16 %v849
        %v1106 = vunpack.c.l.b16 %v850
        %v1107 = vunpack.c.l.b16 %v851
        %v1108 = vunpack.c.l.b16 %v852
        %v1109 = vunpack.c.l.b16 %v853
        %v1110 = vunpack.c.l.b16 %v854
        %v1111 = vunpack.c.l.b16 %v855
        %v1112 = vunpack.c.l.b16 %v856
        %v1113 = vunpack.c.l.b16 %v857
        %v1114 = vunpack.c.l.b16 %v858
        %v1115 = vunpack.c.l.b16 %v859
        %v1116 = vunpack.c.l.b16 %v860
        %v1117 = vunpack.c.l.b16 %v861
        %v1118 = vunpack.c.l.b16 %v862
        %v1119 = vunpack.c.l.b16 %v863
        %v1120 = vunpack.c.l.b16 %v864
        %v1121 = vunpack.c.l.b16 %v865
        %v1122 = vunpack.c.l.b16 %v866
        %v1123 = vunpack.c.l.b16 %v867
        %v1124 = vunpack.c.l.b16 %v868
        %v1125 = vunpack.c.l.b16 %v869
        %v1126 = vunpack.c.l.b16 %v870
        %v1127 = vunpack.c.l.b16 %v871
        %v1128 = vunpack.c.l.b16 %v872
        %v1129 = vunpack.c.l.b16 %v873
        %v1130 = vunpack.c.l.b16 %v874
        %v1131 = vpack.c.b16 %v1004, %v1003
        %v1132 = vpack.c.b16 %v1006, %v1005
        %v1133 = vpack.c.b16 %v1008, %v1007
        %v1134 = vpack.c.b16 %v1010, %v1009
        %v1135 = vpack.c.b16 %v1012, %v1011
        %v1136 = vpack.c.b16 %v1014, %v1013
        %v1137 = vpack.c.b16 %v1016, %v1015
        %v1138 = vpack.c.b16 %v1018, %v1017
        %v1139 = vpack.c.b16 %v1020, %v1019
        %v1140 = vpack.c.b16 %v1022, %v1021
        %v1141 = vpack.c.b16 %v1024, %v1023
        %v1142 = vpack.c.b16 %v1026, %v1025
        %v1143 = vpack.c.b16 %v1028, %v1027
        %v1144 = vpack.c.b16 %v1030, %v1029
        %v1145 = vpack.c.b16 %v1032, %v1031
        %v1146 = vpack.c.b16 %v1034, %v1033
        %v1147 = vpack.c.b16 %v1036, %v1035
        %v1148 = vpack.c.b16 %v1038, %v1037
        %v1149 = vpack.c.b16 %v1040, %v1039
        %v1150 = vpack.c.b16 %v1042, %v1041
        %v1151 = vpack.c.b16 %v1044, %v1043
        %v1152 = vpack.c.b16 %v1046, %v1045
        %v1153 = vpack.c.b16 %v1048, %v1047
        %v1154 = vpack.c.b16 %v1050, %v1049
        %v1155 = vpack.c.b16 %v1052, %v1051
        %v1156 = vpack.c.b16 %v1054, %v1053
        %v1157 = vpack.c.b16 %v1056, %v1055
        %v1158 = vpack.c.b16 %v1058, %v1057
        %v1159 = vpack.c.b16 %v1060, %v1059
        %v1160 = vpack.c.b16 %v1062, %v1061
        %v1161 = vpack.c.b16 %v1064, %v1063
        %v1162 = vpack.c.b16 %v1066, %v1065
        %v1163 = vpack.c.b16 %v1068, %v1067
        %v1164 = vpack.c.b16 %v1070, %v1069
        %v1165 = vpack.c.b16 %v1072, %v1071
        %v1166 = vpack.c.b16 %v1074, %v1073
        %v1167 = vpack.c.b16 %v1076, %v1075
        %v1168 = vpack.c.b16 %v1078, %v1077
        %v1169 = vpack.c.b16 %v1080, %v1079
        %v1170 = vpack.c.b16 %v1082, %v1081
        %v1171 = vpack.c.b16 %v1084, %v1083
        %v1172 = vpack.c.b16 %v1086, %v1085
        %v1173 = vpack.c.b16 %v1088, %v1087
        %v1174 = vpack.c.b16 %v1090, %v1089
        %v1175 = vpack.c.b16 %v1092, %v1091
        %v1176 = vpack.c.b16 %v1094, %v1093
        %v1177 = vpack.c.b16 %v1096, %v1095
        %v1178 = vpack.c.b16 %v1098, %v1097
        %v1179 = vpack.c.b16 %v1100, %v1099
        %v1180 = vpack.c.b16 %v1102, %v1101
        %v1181 = vpack.c.b16 %v1104, %v1103
        %v1182 = vpack.c.b16 %v1106, %v1105
        %v1183 = vpack.c.b16 %v1108, %v1107
        %v1184 = vpack.c.b16 %v1110, %v1109
        %v1185 = vpack.c.b16 %v1112, %v1111
        %v1186 = vpack.c.b16 %v1114, %v1113
        %v1187 = vpack.c.b16 %v1116, %v1115
        %v1188 = vpack.c.b16 %v1118, %v1117
        %v1189 = vpack.c.b16 %v1120, %v1119
        %v1190 = vpack.c.b16 %v1122, %v1121
        %v1191 = vpack.c.b16 %v1124, %v1123
        %v1192 = vpack.c.b16 %v1126, %v1125
        %v1193 = vpack.c.b16 %v1128, %v1127
        %v1194 = vpack.c.b16 %v1130, %v1129
        %1259 = vmatprep.subr.bf16.mxu0 0
        %1260 = vmatpush1.bf16.msra.mxu0 %v1131
        %1261 = vmatprep.subr.bf16.mxu0 0
        %1262 = vmatpush1.bf16.msra.mxu0 %v1132
        %1263 = vmatprep.subr.bf16.mxu0 0
        %1264 = vmatpush1.bf16.msra.mxu0 %v1133
        %1265 = vmatprep.subr.bf16.mxu0 0
        %1266 = vmatpush1.bf16.msra.mxu0 %v1134
        %1267 = vmatprep.subr.bf16.mxu0 0
        %1268 = vmatpush1.bf16.msra.mxu0 %v1135
        %1269 = vmatprep.subr.bf16.mxu0 0
        %1270 = vmatpush1.bf16.msra.mxu0 %v1136
        %1271 = vmatprep.subr.bf16.mxu0 0
        %1272 = vmatpush1.bf16.msra.mxu0 %v1137
        %1273 = vmatprep.subr.bf16.mxu0 0
        %1274 = vmatpush1.bf16.msra.mxu0 %v1138
        %1275 = vmatprep.subr.bf16.mxu0 0
        %1276 = vmatpush1.bf16.msra.mxu0 %v1139
        %1277 = vmatprep.subr.bf16.mxu0 0
        %1278 = vmatpush1.bf16.msra.mxu0 %v1140
        %1279 = vmatprep.subr.bf16.mxu0 0
        %1280 = vmatpush1.bf16.msra.mxu0 %v1141
        %1281 = vmatprep.subr.bf16.mxu0 0
        %1282 = vmatpush1.bf16.msra.mxu0 %v1142
        %1283 = vmatprep.subr.bf16.mxu0 0
        %1284 = vmatpush1.bf16.msra.mxu0 %v1143
        %1285 = vmatprep.subr.bf16.mxu0 0
        %1286 = vmatpush1.bf16.msra.mxu0 %v1144
        %1287 = vmatprep.subr.bf16.mxu0 0
        %1288 = vmatpush1.bf16.msra.mxu0 %v1145
        %1289 = vmatprep.subr.bf16.mxu0 0
        %1290 = vmatpush1.bf16.msra.mxu0 %v1146
        %1291 = vmatprep.mubr.bf16.mxu0 %v620
        %1292 = vmatmul.mubr.bf16.gmra.mrb[0].mxu0 %v619
        %v1293 = vpop.f32.mrb[0].mxu0
        %v1294 = vadd.f32 0.0, %v1293
        %v1295 = vpop.f32.mrb[0].mxu0
        %v1296 = vpop.f32.mrb[0].mxu0
        %v1297 = vadd.f32 0.0, %v1296
        %v1298 = vpop.f32.mrb[0].mxu0
        %1299 = vmatprep.mubr.bf16.mxu0 %v628
        %1300 = vmatmul.mubr.bf16.gmra.mrb[0].mxu0 %v627
        %v1301 = vpop.f32.mrb[0].mxu0
        %v1302 = vadd.f32 0.0, %v1301
        %v1303 = vpop.f32.mrb[0].mxu0
        %v1304 = vpop.f32.mrb[0].mxu0
        %v1305 = vadd.f32 0.0, %v1304
        %v1306 = vpop.f32.mrb[0].mxu0
        %1307 = vmatprep.mubr.bf16.mxu0 %v636
        %1308 = vmatmul.mubr.bf16.gmra.mrb[0].mxu0 %v635
        %v1309 = vpop.f32.mrb[0].mxu0
        %v1310 = vadd.f32 0.0, %v1309
        %v1311 = vpop.f32.mrb[0].mxu0
        %v1312 = vpop.f32.mrb[0].mxu0
        %v1313 = vadd.f32 0.0, %v1312
        %v1314 = vpop.f32.mrb[0].mxu0
        %1315 = vmatprep.mubr.bf16.mxu0 %v644
        %1316 = vmatmul.mubr.bf16.gmra.mrb[0].mxu0 %v643
        %v1317 = vpop.f32.mrb[0].mxu0
        %v1318 = vadd.f32 0.0, %v1317
        %v1319 = vpop.f32.mrb[0].mxu0
        %v1320 = vpop.f32.mrb[0].mxu0
        %v1321 = vadd.f32 0.0, %v1320
        %v1322 = vpop.f32.mrb[0].mxu0
        %1323 = vmatprep.mubr.bf16.mxu0 %v652
        %1324 = vmatmul.mubr.bf16.gmra.mrb[0].mxu0 %v651
        %v1325 = vpop.f32.mrb[0].mxu0
        %v1326 = vadd.f32 0.0, %v1325
        %v1327 = vpop.f32.mrb[0].mxu0
        %v1328 = vpop.f32.mrb[0].mxu0
        %v1329 = vadd.f32 0.0, %v1328
        %v1330 = vpop.f32.mrb[0].mxu0
        %1331 = vmatprep.mubr.bf16.mxu0 %v660
        %1332 = vmatmul.mubr.bf16.gmra.mrb[0].mxu0 %v659
        %v1333 = vpop.f32.mrb[0].mxu0
        %v1334 = vadd.f32 0.0, %v1333
        %v1335 = vpop.f32.mrb[0].mxu0
        %v1336 = vpop.f32.mrb[0].mxu0
        %v1337 = vadd.f32 0.0, %v1336
        %v1338 = vpop.f32.mrb[0].mxu0
        %1339 = vmatprep.mubr.bf16.mxu0 %v668
        %1340 = vmatmul.mubr.bf16.gmra.mrb[0].mxu0 %v667
        %v1341 = vpop.f32.mrb[0].mxu0
        %v1342 = vadd.f32 0.0, %v1341
        %v1343 = vpop.f32.mrb[0].mxu0
        %v1344 = vpop.f32.mrb[0].mxu0
        %v1345 = vadd.f32 0.0, %v1344
        %v1346 = vpop.f32.mrb[0].mxu0
        %1347 = vmatprep.mubr.bf16.mxu0 %v676
        %1348 = vmatmul.mubr.bf16.gmra.mrb[0].mxu0 %v675
        %v1349 = vpop.f32.mrb[0].mxu0
        %v1350 = vadd.f32 0.0, %v1349
        %v1351 = vpop.f32.mrb[0].mxu0
        %v1352 = vpop.f32.mrb[0].mxu0
        %v1353 = vadd.f32 0.0, %v1352
        %v1354 = vpop.f32.mrb[0].mxu0
        %1355 = vmatprep.mubr.bf16.mxu0 %v684
        %1356 = vmatmul.mubr.bf16.gmra.mrb[0].mxu0 %v683
        %v1357 = vpop.f32.mrb[0].mxu0
        %v1358 = vadd.f32 0.0, %v1357
        %v1359 = vpop.f32.mrb[0].mxu0
        %v1360 = vpop.f32.mrb[0].mxu0
        %v1361 = vadd.f32 0.0, %v1360
        %v1362 = vpop.f32.mrb[0].mxu0
        %1363 = vmatprep.mubr.bf16.mxu0 %v692
        %1364 = vmatmul.mubr.bf16.gmra.mrb[0].mxu0 %v691
        %v1365 = vpop.f32.mrb[0].mxu0
        %v1366 = vadd.f32 0.0, %v1365
        %v1367 = vpop.f32.mrb[0].mxu0
        %v1368 = vpop.f32.mrb[0].mxu0
        %v1369 = vadd.f32 0.0, %v1368
        %v1370 = vpop.f32.mrb[0].mxu0
        %1371 = vmatprep.mubr.bf16.mxu0 %v700
        %1372 = vmatmul.mubr.bf16.gmra.mrb[0].mxu0 %v699
        %v1373 = vpop.f32.mrb[0].mxu0
        %v1374 = vadd.f32 0.0, %v1373
        %v1375 = vpop.f32.mrb[0].mxu0
        %v1376 = vpop.f32.mrb[0].mxu0
        %v1377 = vadd.f32 0.0, %v1376
        %v1378 = vpop.f32.mrb[0].mxu0
        %1379 = vmatprep.mubr.bf16.mxu0 %v708
        %1380 = vmatmul.mubr.bf16.gmra.mrb[0].mxu0 %v707
        %v1381 = vpop.f32.mrb[0].mxu0
        %v1382 = vadd.f32 0.0, %v1381
        %v1383 = vpop.f32.mrb[0].mxu0
        %v1384 = vpop.f32.mrb[0].mxu0
        %v1385 = vadd.f32 0.0, %v1384
        %v1386 = vpop.f32.mrb[0].mxu0
        %1387 = vmatprep.mubr.bf16.mxu0 %v716
        %1388 = vmatmul.mubr.bf16.gmra.mrb[0].mxu0 %v715
        %v1389 = vpop.f32.mrb[0].mxu0
        %v1390 = vadd.f32 0.0, %v1389
        %v1391 = vpop.f32.mrb[0].mxu0
        %v1392 = vpop.f32.mrb[0].mxu0
        %v1393 = vadd.f32 0.0, %v1392
        %v1394 = vpop.f32.mrb[0].mxu0
        %1395 = vmatprep.mubr.bf16.mxu0 %v724
        %1396 = vmatmul.mubr.bf16.gmra.mrb[0].mxu0 %v723
        %v1397 = vpop.f32.mrb[0].mxu0
        %v1398 = vadd.f32 0.0, %v1397
        %v1399 = vpop.f32.mrb[0].mxu0
        %v1400 = vpop.f32.mrb[0].mxu0
        %v1401 = vadd.f32 0.0, %v1400
        %v1402 = vpop.f32.mrb[0].mxu0
        %1403 = vmatprep.mubr.bf16.mxu0 %v732
        %1404 = vmatmul.mubr.bf16.gmra.mrb[0].mxu0 %v731
        %v1405 = vpop.f32.mrb[0].mxu0
        %v1406 = vadd.f32 0.0, %v1405
        %v1407 = vpop.f32.mrb[0].mxu0
        %v1408 = vpop.f32.mrb[0].mxu0
        %v1409 = vadd.f32 0.0, %v1408
        %v1410 = vpop.f32.mrb[0].mxu0
        %1411 = vmatprep.mubr.bf16.mxu0 %v740
        %1412 = vmatmul.mubr.bf16.gmra.mrb[0].mxu0 %v739
        %v1413 = vpop.f32.mrb[0].mxu0
        %v1414 = vadd.f32 0.0, %v1413
        %v1415 = vpop.f32.mrb[0].mxu0
        %v1416 = vpop.f32.mrb[0].mxu0
        %v1417 = vadd.f32 0.0, %v1416
        %v1418 = vpop.f32.mrb[0].mxu0
        %1419 = vdwg.mxu0
        %1420 = vmatprep.subr.bf16.mxu0 0
        %1421 = vmatpush1.bf16.msra.mxu0 %v1147
        %1422 = vmatprep.subr.bf16.mxu0 0
        %1423 = vmatpush1.bf16.msra.mxu0 %v1148
        %1424 = vmatprep.subr.bf16.mxu0 0
        %1425 = vmatpush1.bf16.msra.mxu0 %v1149
        %1426 = vmatprep.subr.bf16.mxu0 0
        %1427 = vmatpush1.bf16.msra.mxu0 %v1150
        %1428 = vmatprep.subr.bf16.mxu0 0
        %1429 = vmatpush1.bf16.msra.mxu0 %v1151
        %1430 = vmatprep.subr.bf16.mxu0 0
        %1431 = vmatpush1.bf16.msra.mxu0 %v1152
        %1432 = vmatprep.subr.bf16.mxu0 0
        %1433 = vmatpush1.bf16.msra.mxu0 %v1153
        %1434 = vmatprep.subr.bf16.mxu0 0
        %1435 = vmatpush1.bf16.msra.mxu0 %v1154
        %1436 = vmatprep.subr.bf16.mxu0 0
        %1437 = vmatpush1.bf16.msra.mxu0 %v1155
        %1438 = vmatprep.subr.bf16.mxu0 0
        %1439 = vmatpush1.bf16.msra.mxu0 %v1156
        %1440 = vmatprep.subr.bf16.mxu0 0
        %1441 = vmatpush1.bf16.msra.mxu0 %v1157
        %1442 = vmatprep.subr.bf16.mxu0 0
        %1443 = vmatpush1.bf16.msra.mxu0 %v1158
        %1444 = vmatprep.subr.bf16.mxu0 0
        %1445 = vmatpush1.bf16.msra.mxu0 %v1159
        %1446 = vmatprep.subr.bf16.mxu0 0
        %1447 = vmatpush1.bf16.msra.mxu0 %v1160
        %1448 = vmatprep.subr.bf16.mxu0 0
        %1449 = vmatpush1.bf16.msra.mxu0 %v1161
        %1450 = vmatprep.subr.bf16.mxu0 0
        %1451 = vmatpush1.bf16.msra.mxu0 %v1162
        %1452 = vmatprep.mubr.bf16.mxu0 %v622
        %1453 = vmatmul.mubr.bf16.gmra.mrb[0].mxu0 %v621
        %v1454 = vpop.f32.mrb[0].mxu0
        %v1455 = vadd.f32 %v1294, %v1454
        %v1456 = vpop.f32.mrb[0].mxu0
        %v1457 = vpop.f32.mrb[0].mxu0
        %v1458 = vadd.f32 %v1297, %v1457
        %v1459 = vpop.f32.mrb[0].mxu0
        %1460 = vmatprep.mubr.bf16.mxu0 %v630
        %1461 = vmatmul.mubr.bf16.gmra.mrb[0].mxu0 %v629
        %v1462 = vpop.f32.mrb[0].mxu0
        %v1463 = vadd.f32 %v1302, %v1462
        %v1464 = vpop.f32.mrb[0].mxu0
        %v1465 = vpop.f32.mrb[0].mxu0
        %v1466 = vadd.f32 %v1305, %v1465
        %v1467 = vpop.f32.mrb[0].mxu0
        %1468 = vmatprep.mubr.bf16.mxu0 %v638
        %1469 = vmatmul.mubr.bf16.gmra.mrb[0].mxu0 %v637
        %v1470 = vpop.f32.mrb[0].mxu0
        %v1471 = vadd.f32 %v1310, %v1470
        %v1472 = vpop.f32.mrb[0].mxu0
        %v1473 = vpop.f32.mrb[0].mxu0
        %v1474 = vadd.f32 %v1313, %v1473
        %v1475 = vpop.f32.mrb[0].mxu0
        %1476 = vmatprep.mubr.bf16.mxu0 %v646
        %1477 = vmatmul.mubr.bf16.gmra.mrb[0].mxu0 %v645
        %v1478 = vpop.f32.mrb[0].mxu0
        %v1479 = vadd.f32 %v1318, %v1478
        %v1480 = vpop.f32.mrb[0].mxu0
        %v1481 = vpop.f32.mrb[0].mxu0
        %v1482 = vadd.f32 %v1321, %v1481
        %v1483 = vpop.f32.mrb[0].mxu0
        %1484 = vmatprep.mubr.bf16.mxu0 %v654
        %1485 = vmatmul.mubr.bf16.gmra.mrb[0].mxu0 %v653
        %v1486 = vpop.f32.mrb[0].mxu0
        %v1487 = vadd.f32 %v1326, %v1486
        %v1488 = vpop.f32.mrb[0].mxu0
        %v1489 = vpop.f32.mrb[0].mxu0
        %v1490 = vadd.f32 %v1329, %v1489
        %v1491 = vpop.f32.mrb[0].mxu0
        %1492 = vmatprep.mubr.bf16.mxu0 %v662
        %1493 = vmatmul.mubr.bf16.gmra.mrb[0].mxu0 %v661
        %v1494 = vpop.f32.mrb[0].mxu0
        %v1495 = vadd.f32 %v1334, %v1494
        %v1496 = vpop.f32.mrb[0].mxu0
        %v1497 = vpop.f32.mrb[0].mxu0
        %v1498 = vadd.f32 %v1337, %v1497
        %v1499 = vpop.f32.mrb[0].mxu0
        %1500 = vmatprep.mubr.bf16.mxu0 %v670
        %1501 = vmatmul.mubr.bf16.gmra.mrb[0].mxu0 %v669
        %v1502 = vpop.f32.mrb[0].mxu0
        %v1503 = vadd.f32 %v1342, %v1502
        %v1504 = vpop.f32.mrb[0].mxu0
        %v1505 = vpop.f32.mrb[0].mxu0
        %v1506 = vadd.f32 %v1345, %v1505
        %v1507 = vpop.f32.mrb[0].mxu0
        %1508 = vmatprep.mubr.bf16.mxu0 %v678
        %1509 = vmatmul.mubr.bf16.gmra.mrb[0].mxu0 %v677
        %v1510 = vpop.f32.mrb[0].mxu0
        %v1511 = vadd.f32 %v1350, %v1510
        %v1512 = vpop.f32.mrb[0].mxu0
        %v1513 = vpop.f32.mrb[0].mxu0
        %v1514 = vadd.f32 %v1353, %v1513
        %v1515 = vpop.f32.mrb[0].mxu0
        %1516 = vmatprep.mubr.bf16.mxu0 %v686
        %1517 = vmatmul.mubr.bf16.gmra.mrb[0].mxu0 %v685
        %v1518 = vpop.f32.mrb[0].mxu0
        %v1519 = vadd.f32 %v1358, %v1518
        %v1520 = vpop.f32.mrb[0].mxu0
        %v1521 = vpop.f32.mrb[0].mxu0
        %v1522 = vadd.f32 %v1361, %v1521
        %v1523 = vpop.f32.mrb[0].mxu0
        %1524 = vmatprep.mubr.bf16.mxu0 %v694
        %1525 = vmatmul.mubr.bf16.gmra.mrb[0].mxu0 %v693
        %v1526 = vpop.f32.mrb[0].mxu0
        %v1527 = vadd.f32 %v1366, %v1526
        %v1528 = vpop.f32.mrb[0].mxu0
        %v1529 = vpop.f32.mrb[0].mxu0
        %v1530 = vadd.f32 %v1369, %v1529
        %v1531 = vpop.f32.mrb[0].mxu0
        %1532 = vmatprep.mubr.bf16.mxu0 %v702
        %1533 = vmatmul.mubr.bf16.gmra.mrb[0].mxu0 %v701
        %v1534 = vpop.f32.mrb[0].mxu0
        %v1535 = vadd.f32 %v1374, %v1534
        %v1536 = vpop.f32.mrb[0].mxu0
        %v1537 = vpop.f32.mrb[0].mxu0
        %v1538 = vadd.f32 %v1377, %v1537
        %v1539 = vpop.f32.mrb[0].mxu0
        %1540 = vmatprep.mubr.bf16.mxu0 %v710
        %1541 = vmatmul.mubr.bf16.gmra.mrb[0].mxu0 %v709
        %v1542 = vpop.f32.mrb[0].mxu0
        %v1543 = vadd.f32 %v1382, %v1542
        %v1544 = vpop.f32.mrb[0].mxu0
        %v1545 = vpop.f32.mrb[0].mxu0
        %v1546 = vadd.f32 %v1385, %v1545
        %v1547 = vpop.f32.mrb[0].mxu0
        %1548 = vmatprep.mubr.bf16.mxu0 %v718
        %1549 = vmatmul.mubr.bf16.gmra.mrb[0].mxu0 %v717
        %v1550 = vpop.f32.mrb[0].mxu0
        %v1551 = vadd.f32 %v1390, %v1550
        %v1552 = vpop.f32.mrb[0].mxu0
        %v1553 = vpop.f32.mrb[0].mxu0
        %v1554 = vadd.f32 %v1393, %v1553
        %v1555 = vpop.f32.mrb[0].mxu0
        %1556 = vmatprep.mubr.bf16.mxu0 %v726
        %1557 = vmatmul.mubr.bf16.gmra.mrb[0].mxu0 %v725
        %v1558 = vpop.f32.mrb[0].mxu0
        %v1559 = vadd.f32 %v1398, %v1558
        %v1560 = vpop.f32.mrb[0].mxu0
        %v1561 = vpop.f32.mrb[0].mxu0
        %v1562 = vadd.f32 %v1401, %v1561
        %v1563 = vpop.f32.mrb[0].mxu0
        %1564 = vmatprep.mubr.bf16.mxu0 %v734
        %1565 = vmatmul.mubr.bf16.gmra.mrb[0].mxu0 %v733
        %v1566 = vpop.f32.mrb[0].mxu0
        %v1567 = vadd.f32 %v1406, %v1566
        %v1568 = vpop.f32.mrb[0].mxu0
        %v1569 = vpop.f32.mrb[0].mxu0
        %v1570 = vadd.f32 %v1409, %v1569
        %v1571 = vpop.f32.mrb[0].mxu0
        %1572 = vmatprep.mubr.bf16.mxu0 %v742
        %1573 = vmatmul.mubr.bf16.gmra.mrb[0].mxu0 %v741
        %v1574 = vpop.f32.mrb[0].mxu0
        %v1575 = vadd.f32 %v1414, %v1574
        %v1576 = vpop.f32.mrb[0].mxu0
        %v1577 = vpop.f32.mrb[0].mxu0
        %v1578 = vadd.f32 %v1417, %v1577
        %v1579 = vpop.f32.mrb[0].mxu0
        %1580 = vdwg.mxu0
        %1581 = vmatprep.subr.bf16.mxu0 0
        %1582 = vmatpush1.bf16.msra.mxu0 %v1163
        %1583 = vmatprep.subr.bf16.mxu0 0
        %1584 = vmatpush1.bf16.msra.mxu0 %v1164
        %1585 = vmatprep.subr.bf16.mxu0 0
        %1586 = vmatpush1.bf16.msra.mxu0 %v1165
        %1587 = vmatprep.subr.bf16.mxu0 0
        %1588 = vmatpush1.bf16.msra.mxu0 %v1166
        %1589 = vmatprep.subr.bf16.mxu0 0
        %1590 = vmatpush1.bf16.msra.mxu0 %v1167
        %1591 = vmatprep.subr.bf16.mxu0 0
        %1592 = vmatpush1.bf16.msra.mxu0 %v1168
        %1593 = vmatprep.subr.bf16.mxu0 0
        %1594 = vmatpush1.bf16.msra.mxu0 %v1169
        %1595 = vmatprep.subr.bf16.mxu0 0
        %1596 = vmatpush1.bf16.msra.mxu0 %v1170
        %1597 = vmatprep.subr.bf16.mxu0 0
        %1598 = vmatpush1.bf16.msra.mxu0 %v1171
        %1599 = vmatprep.subr.bf16.mxu0 0
        %1600 = vmatpush1.bf16.msra.mxu0 %v1172
        %1601 = vmatprep.subr.bf16.mxu0 0
        %1602 = vmatpush1.bf16.msra.mxu0 %v1173
        %1603 = vmatprep.subr.bf16.mxu0 0
        %1604 = vmatpush1.bf16.msra.mxu0 %v1174
        %1605 = vmatprep.subr.bf16.mxu0 0
        %1606 = vmatpush1.bf16.msra.mxu0 %v1175
        %1607 = vmatprep.subr.bf16.mxu0 0
        %1608 = vmatpush1.bf16.msra.mxu0 %v1176
        %1609 = vmatprep.subr.bf16.mxu0 0
        %1610 = vmatpush1.bf16.msra.mxu0 %v1177
        %1611 = vmatprep.subr.bf16.mxu0 0
        %1612 = vmatpush1.bf16.msra.mxu0 %v1178
        %1613 = vmatprep.mubr.bf16.mxu0 %v624
        %1614 = vmatmul.mubr.bf16.gmra.mrb[0].mxu0 %v623
        %v1615 = vpop.f32.mrb[0].mxu0
        %v1616 = vadd.f32 %v1455, %v1615
        %v1617 = vpop.f32.mrb[0].mxu0
        %v1618 = vpop.f32.mrb[0].mxu0
        %v1619 = vadd.f32 %v1458, %v1618
        %v1620 = vpop.f32.mrb[0].mxu0
        %1621 = vmatprep.mubr.bf16.mxu0 %v632
        %1622 = vmatmul.mubr.bf16.gmra.mrb[0].mxu0 %v631
        %v1623 = vpop.f32.mrb[0].mxu0
        %v1624 = vadd.f32 %v1463, %v1623
        %v1625 = vpop.f32.mrb[0].mxu0
        %v1626 = vpop.f32.mrb[0].mxu0
        %v1627 = vadd.f32 %v1466, %v1626
        %v1628 = vpop.f32.mrb[0].mxu0
        %1629 = vmatprep.mubr.bf16.mxu0 %v640
        %1630 = vmatmul.mubr.bf16.gmra.mrb[0].mxu0 %v639
        %v1631 = vpop.f32.mrb[0].mxu0
        %v1632 = vadd.f32 %v1471, %v1631
        %v1633 = vpop.f32.mrb[0].mxu0
        %v1634 = vpop.f32.mrb[0].mxu0
        %v1635 = vadd.f32 %v1474, %v1634
        %v1636 = vpop.f32.mrb[0].mxu0
        %1637 = vmatprep.mubr.bf16.mxu0 %v648
        %1638 = vmatmul.mubr.bf16.gmra.mrb[0].mxu0 %v647
        %v1639 = vpop.f32.mrb[0].mxu0
        %v1640 = vadd.f32 %v1479, %v1639
        %v1641 = vpop.f32.mrb[0].mxu0
        %v1642 = vpop.f32.mrb[0].mxu0
        %v1643 = vadd.f32 %v1482, %v1642
        %v1644 = vpop.f32.mrb[0].mxu0
        %1645 = vmatprep.mubr.bf16.mxu0 %v656
        %1646 = vmatmul.mubr.bf16.gmra.mrb[0].mxu0 %v655
        %v1647 = vpop.f32.mrb[0].mxu0
        %v1648 = vadd.f32 %v1487, %v1647
        %v1649 = vpop.f32.mrb[0].mxu0
        %v1650 = vpop.f32.mrb[0].mxu0
        %v1651 = vadd.f32 %v1490, %v1650
        %v1652 = vpop.f32.mrb[0].mxu0
        %1653 = vmatprep.mubr.bf16.mxu0 %v664
        %1654 = vmatmul.mubr.bf16.gmra.mrb[0].mxu0 %v663
        %v1655 = vpop.f32.mrb[0].mxu0
        %v1656 = vadd.f32 %v1495, %v1655
        %v1657 = vpop.f32.mrb[0].mxu0
        %v1658 = vpop.f32.mrb[0].mxu0
        %v1659 = vadd.f32 %v1498, %v1658
        %v1660 = vpop.f32.mrb[0].mxu0
        %1661 = vmatprep.mubr.bf16.mxu0 %v672
        %1662 = vmatmul.mubr.bf16.gmra.mrb[0].mxu0 %v671
        %v1663 = vpop.f32.mrb[0].mxu0
        %v1664 = vadd.f32 %v1503, %v1663
        %v1665 = vpop.f32.mrb[0].mxu0
        %v1666 = vpop.f32.mrb[0].mxu0
        %v1667 = vadd.f32 %v1506, %v1666
        %v1668 = vpop.f32.mrb[0].mxu0
        %1669 = vmatprep.mubr.bf16.mxu0 %v680
        %1670 = vmatmul.mubr.bf16.gmra.mrb[0].mxu0 %v679
        %v1671 = vpop.f32.mrb[0].mxu0
        %v1672 = vadd.f32 %v1511, %v1671
        %v1673 = vpop.f32.mrb[0].mxu0
        %v1674 = vpop.f32.mrb[0].mxu0
        %v1675 = vadd.f32 %v1514, %v1674
        %v1676 = vpop.f32.mrb[0].mxu0
        %1677 = vmatprep.mubr.bf16.mxu0 %v688
        %1678 = vmatmul.mubr.bf16.gmra.mrb[0].mxu0 %v687
        %v1679 = vpop.f32.mrb[0].mxu0
        %v1680 = vadd.f32 %v1519, %v1679
        %v1681 = vpop.f32.mrb[0].mxu0
        %v1682 = vpop.f32.mrb[0].mxu0
        %v1683 = vadd.f32 %v1522, %v1682
        %v1684 = vpop.f32.mrb[0].mxu0
        %1685 = vmatprep.mubr.bf16.mxu0 %v696
        %1686 = vmatmul.mubr.bf16.gmra.mrb[0].mxu0 %v695
        %v1687 = vpop.f32.mrb[0].mxu0
        %v1688 = vadd.f32 %v1527, %v1687
        %v1689 = vpop.f32.mrb[0].mxu0
        %v1690 = vpop.f32.mrb[0].mxu0
        %v1691 = vadd.f32 %v1530, %v1690
        %v1692 = vpop.f32.mrb[0].mxu0
        %1693 = vmatprep.mubr.bf16.mxu0 %v704
        %1694 = vmatmul.mubr.bf16.gmra.mrb[0].mxu0 %v703
        %v1695 = vpop.f32.mrb[0].mxu0
        %v1696 = vadd.f32 %v1535, %v1695
        %v1697 = vpop.f32.mrb[0].mxu0
        %v1698 = vpop.f32.mrb[0].mxu0
        %v1699 = vadd.f32 %v1538, %v1698
        %v1700 = vpop.f32.mrb[0].mxu0
        %1701 = vmatprep.mubr.bf16.mxu0 %v712
        %1702 = vmatmul.mubr.bf16.gmra.mrb[0].mxu0 %v711
        %v1703 = vpop.f32.mrb[0].mxu0
        %v1704 = vadd.f32 %v1543, %v1703
        %v1705 = vpop.f32.mrb[0].mxu0
        %v1706 = vpop.f32.mrb[0].mxu0
        %v1707 = vadd.f32 %v1546, %v1706
        %v1708 = vpop.f32.mrb[0].mxu0
        %1709 = vmatprep.mubr.bf16.mxu0 %v720
        %1710 = vmatmul.mubr.bf16.gmra.mrb[0].mxu0 %v719
        %v1711 = vpop.f32.mrb[0].mxu0
        %v1712 = vadd.f32 %v1551, %v1711
        %v1713 = vpop.f32.mrb[0].mxu0
        %v1714 = vpop.f32.mrb[0].mxu0
        %v1715 = vadd.f32 %v1554, %v1714
        %v1716 = vpop.f32.mrb[0].mxu0
        %1717 = vmatprep.mubr.bf16.mxu0 %v728
        %1718 = vmatmul.mubr.bf16.gmra.mrb[0].mxu0 %v727
        %v1719 = vpop.f32.mrb[0].mxu0
        %v1720 = vadd.f32 %v1559, %v1719
        %v1721 = vpop.f32.mrb[0].mxu0
        %v1722 = vpop.f32.mrb[0].mxu0
        %v1723 = vadd.f32 %v1562, %v1722
        %v1724 = vpop.f32.mrb[0].mxu0
        %1725 = vmatprep.mubr.bf16.mxu0 %v736
        %1726 = vmatmul.mubr.bf16.gmra.mrb[0].mxu0 %v735
        %v1727 = vpop.f32.mrb[0].mxu0
        %v1728 = vadd.f32 %v1567, %v1727
        %v1729 = vpop.f32.mrb[0].mxu0
        %v1730 = vpop.f32.mrb[0].mxu0
        %v1731 = vadd.f32 %v1570, %v1730
        %v1732 = vpop.f32.mrb[0].mxu0
        %1733 = vmatprep.mubr.bf16.mxu0 %v744
        %1734 = vmatmul.mubr.bf16.gmra.mrb[0].mxu0 %v743
        %v1735 = vpop.f32.mrb[0].mxu0
        %v1736 = vadd.f32 %v1575, %v1735
        %v1737 = vpop.f32.mrb[0].mxu0
        %v1738 = vpop.f32.mrb[0].mxu0
        %v1739 = vadd.f32 %v1578, %v1738
        %v1740 = vpop.f32.mrb[0].mxu0
        %1741 = vdwg.mxu0
        %1742 = vmatprep.subr.bf16.mxu0 0
        %1743 = vmatpush1.bf16.msra.mxu0 %v1179
        %1744 = vmatprep.subr.bf16.mxu0 0
        %1745 = vmatpush1.bf16.msra.mxu0 %v1180
        %1746 = vmatprep.subr.bf16.mxu0 0
        %1747 = vmatpush1.bf16.msra.mxu0 %v1181
        %1748 = vmatprep.subr.bf16.mxu0 0
        %1749 = vmatpush1.bf16.msra.mxu0 %v1182
        %1750 = vmatprep.subr.bf16.mxu0 0
        %1751 = vmatpush1.bf16.msra.mxu0 %v1183
        %1752 = vmatprep.subr.bf16.mxu0 0
        %1753 = vmatpush1.bf16.msra.mxu0 %v1184
        %1754 = vmatprep.subr.bf16.mxu0 0
        %1755 = vmatpush1.bf16.msra.mxu0 %v1185
        %1756 = vmatprep.subr.bf16.mxu0 0
        %1757 = vmatpush1.bf16.msra.mxu0 %v1186
        %1758 = vmatprep.subr.bf16.mxu0 0
        %1759 = vmatpush1.bf16.msra.mxu0 %v1187
        %1760 = vmatprep.subr.bf16.mxu0 0
        %1761 = vmatpush1.bf16.msra.mxu0 %v1188
        %1762 = vmatprep.subr.bf16.mxu0 0
        %1763 = vmatpush1.bf16.msra.mxu0 %v1189
        %1764 = vmatprep.subr.bf16.mxu0 0
        %1765 = vmatpush1.bf16.msra.mxu0 %v1190
        %1766 = vmatprep.subr.bf16.mxu0 0
        %1767 = vmatpush1.bf16.msra.mxu0 %v1191
        %1768 = vmatprep.subr.bf16.mxu0 0
        %1769 = vmatpush1.bf16.msra.mxu0 %v1192
        %1770 = vmatprep.subr.bf16.mxu0 0
        %1771 = vmatpush1.bf16.msra.mxu0 %v1193
        %1772 = vmatprep.subr.bf16.mxu0 0
        %1773 = vmatpush1.bf16.msra.mxu0 %v1194
        %1774 = vmatprep.mubr.bf16.mxu0 %v626
        %1775 = vmatmul.mubr.bf16.gmra.mrb[0].mxu0 %v625
        %v1776 = vpop.f32.mrb[0].mxu0
        %v1777 = vadd.f32 %v1616, %v1776
        %v1778 = vpop.f32.mrb[0].mxu0
        %v1779 = vpop.f32.mrb[0].mxu0
        %v1780 = vadd.f32 %v1619, %v1779
        %v1781 = vpop.f32.mrb[0].mxu0
        %1782 = vmatprep.mubr.bf16.mxu0 %v634
        %1783 = vmatmul.mubr.bf16.gmra.mrb[0].mxu0 %v633
        %v1784 = vpop.f32.mrb[0].mxu0
        %v1785 = vadd.f32 %v1624, %v1784
        %v1786 = vpop.f32.mrb[0].mxu0
        %v1787 = vpop.f32.mrb[0].mxu0
        %v1788 = vadd.f32 %v1627, %v1787
        %v1789 = vpop.f32.mrb[0].mxu0
        %1790 = vmatprep.mubr.bf16.mxu0 %v642
        %1791 = vmatmul.mubr.bf16.gmra.mrb[0].mxu0 %v641
        %v1792 = vpop.f32.mrb[0].mxu0
        %v1793 = vadd.f32 %v1632, %v1792
        %v1794 = vpop.f32.mrb[0].mxu0
        %v1795 = vpop.f32.mrb[0].mxu0
        %v1796 = vadd.f32 %v1635, %v1795
        %v1797 = vpop.f32.mrb[0].mxu0
        %1798 = vmatprep.mubr.bf16.mxu0 %v650
        %1799 = vmatmul.mubr.bf16.gmra.mrb[0].mxu0 %v649
        %v1800 = vpop.f32.mrb[0].mxu0
        %v1801 = vadd.f32 %v1640, %v1800
        %v1802 = vpop.f32.mrb[0].mxu0
        %v1803 = vpop.f32.mrb[0].mxu0
        %v1804 = vadd.f32 %v1643, %v1803
        %v1805 = vpop.f32.mrb[0].mxu0
        %1806 = vmatprep.mubr.bf16.mxu0 %v658
        %1807 = vmatmul.mubr.bf16.gmra.mrb[0].mxu0 %v657
        %v1808 = vpop.f32.mrb[0].mxu0
        %v1809 = vadd.f32 %v1648, %v1808
        %v1810 = vpop.f32.mrb[0].mxu0
        %v1811 = vpop.f32.mrb[0].mxu0
        %v1812 = vadd.f32 %v1651, %v1811
        %v1813 = vpop.f32.mrb[0].mxu0
        %1814 = vmatprep.mubr.bf16.mxu0 %v666
        %1815 = vmatmul.mubr.bf16.gmra.mrb[0].mxu0 %v665
        %v1816 = vpop.f32.mrb[0].mxu0
        %v1817 = vadd.f32 %v1656, %v1816
        %v1818 = vpop.f32.mrb[0].mxu0
        %v1819 = vpop.f32.mrb[0].mxu0
        %v1820 = vadd.f32 %v1659, %v1819
        %v1821 = vpop.f32.mrb[0].mxu0
        %1822 = vmatprep.mubr.bf16.mxu0 %v674
        %1823 = vmatmul.mubr.bf16.gmra.mrb[0].mxu0 %v673
        %v1824 = vpop.f32.mrb[0].mxu0
        %v1825 = vadd.f32 %v1664, %v1824
        %v1826 = vpop.f32.mrb[0].mxu0
        %v1827 = vpop.f32.mrb[0].mxu0
        %v1828 = vadd.f32 %v1667, %v1827
        %v1829 = vpop.f32.mrb[0].mxu0
        %1830 = vmatprep.mubr.bf16.mxu0 %v682
        %1831 = vmatmul.mubr.bf16.gmra.mrb[0].mxu0 %v681
        %v1832 = vpop.f32.mrb[0].mxu0
        %v1833 = vadd.f32 %v1672, %v1832
        %v1834 = vpop.f32.mrb[0].mxu0
        %v1835 = vpop.f32.mrb[0].mxu0
        %v1836 = vadd.f32 %v1675, %v1835
        %v1837 = vpop.f32.mrb[0].mxu0
        %1838 = vmatprep.mubr.bf16.mxu0 %v690
        %1839 = vmatmul.mubr.bf16.gmra.mrb[0].mxu0 %v689
        %v1840 = vpop.f32.mrb[0].mxu0
        %v1841 = vadd.f32 %v1680, %v1840
        %v1842 = vpop.f32.mrb[0].mxu0
        %v1843 = vpop.f32.mrb[0].mxu0
        %v1844 = vadd.f32 %v1683, %v1843
        %v1845 = vpop.f32.mrb[0].mxu0
        %1846 = vmatprep.mubr.bf16.mxu0 %v698
        %1847 = vmatmul.mubr.bf16.gmra.mrb[0].mxu0 %v697
        %v1848 = vpop.f32.mrb[0].mxu0
        %v1849 = vadd.f32 %v1688, %v1848
        %v1850 = vpop.f32.mrb[0].mxu0
        %v1851 = vpop.f32.mrb[0].mxu0
        %v1852 = vadd.f32 %v1691, %v1851
        %v1853 = vpop.f32.mrb[0].mxu0
        %1854 = vmatprep.mubr.bf16.mxu0 %v706
        %1855 = vmatmul.mubr.bf16.gmra.mrb[0].mxu0 %v705
        %v1856 = vpop.f32.mrb[0].mxu0
        %v1857 = vadd.f32 %v1696, %v1856
        %v1858 = vpop.f32.mrb[0].mxu0
        %v1859 = vpop.f32.mrb[0].mxu0
        %v1860 = vadd.f32 %v1699, %v1859
        %v1861 = vpop.f32.mrb[0].mxu0
        %1862 = vmatprep.mubr.bf16.mxu0 %v714
        %1863 = vmatmul.mubr.bf16.gmra.mrb[0].mxu0 %v713
        %v1864 = vpop.f32.mrb[0].mxu0
        %v1865 = vadd.f32 %v1704, %v1864
        %v1866 = vpop.f32.mrb[0].mxu0
        %v1867 = vpop.f32.mrb[0].mxu0
        %v1868 = vadd.f32 %v1707, %v1867
        %v1869 = vpop.f32.mrb[0].mxu0
        %1870 = vmatprep.mubr.bf16.mxu0 %v722
        %1871 = vmatmul.mubr.bf16.gmra.mrb[0].mxu0 %v721
        %v1872 = vpop.f32.mrb[0].mxu0
        %v1873 = vadd.f32 %v1712, %v1872
        %v1874 = vpop.f32.mrb[0].mxu0
        %v1875 = vpop.f32.mrb[0].mxu0
        %v1876 = vadd.f32 %v1715, %v1875
        %v1877 = vpop.f32.mrb[0].mxu0
        %1878 = vmatprep.mubr.bf16.mxu0 %v730
        %1879 = vmatmul.mubr.bf16.gmra.mrb[0].mxu0 %v729
        %v1880 = vpop.f32.mrb[0].mxu0
        %v1881 = vadd.f32 %v1720, %v1880
        %v1882 = vpop.f32.mrb[0].mxu0
        %v1883 = vpop.f32.mrb[0].mxu0
        %v1884 = vadd.f32 %v1723, %v1883
        %v1885 = vpop.f32.mrb[0].mxu0
        %1886 = vmatprep.mubr.bf16.mxu0 %v738
        %1887 = vmatmul.mubr.bf16.gmra.mrb[0].mxu0 %v737
        %v1888 = vpop.f32.mrb[0].mxu0
        %v1889 = vadd.f32 %v1728, %v1888
        %v1890 = vpop.f32.mrb[0].mxu0
        %v1891 = vpop.f32.mrb[0].mxu0
        %v1892 = vadd.f32 %v1731, %v1891
        %v1893 = vpop.f32.mrb[0].mxu0
        %1894 = vmatprep.mubr.bf16.mxu0 %v746
        %1895 = vmatmul.mubr.bf16.gmra.mrb[0].mxu0 %v745
        %v1896 = vpop.f32.mrb[0].mxu0
        %v1897 = vadd.f32 %v1736, %v1896
        %v1898 = vpop.f32.mrb[0].mxu0
        %v1899 = vpop.f32.mrb[0].mxu0
        %v1900 = vadd.f32 %v1739, %v1899
        %v1901 = vpop.f32.mrb[0].mxu0
        %1902 = vdwg.mxu0
        %v1903 = vadd.f32 %v331, %v1777
        %v1904 = vadd.f32 %v332, %v1780
        %v1905 = vadd.f32 %v333, %v1785
        %v1906 = vadd.f32 %v334, %v1788
        %v1907 = vadd.f32 %v335, %v1793
        %v1908 = vadd.f32 %v336, %v1796
        %v1909 = vadd.f32 %v337, %v1801
        %v1910 = vadd.f32 %v338, %v1804
        %v1911 = vadd.f32 %v339, %v1809
        %v1912 = vadd.f32 %v340, %v1812
        %v1913 = vadd.f32 %v341, %v1817
        %v1914 = vadd.f32 %v342, %v1820
        %v1915 = vadd.f32 %v343, %v1825
        %v1916 = vadd.f32 %v344, %v1828
        %v1917 = vadd.f32 %v345, %v1833
        %v1918 = vadd.f32 %v346, %v1836
        %v1919 = vadd.f32 %v347, %v1841
        %v1920 = vadd.f32 %v348, %v1844
        %v1921 = vadd.f32 %v349, %v1849
        %v1922 = vadd.f32 %v350, %v1852
        %v1923 = vadd.f32 %v351, %v1857
        %v1924 = vadd.f32 %v352, %v1860
        %v1925 = vadd.f32 %v353, %v1865
        %v1926 = vadd.f32 %v354, %v1868
        %v1927 = vadd.f32 %v355, %v1873
        %v1928 = vadd.f32 %v356, %v1876
        %v1929 = vadd.f32 %v357, %v1881
        %v1930 = vadd.f32 %v358, %v1884
        %v1931 = vadd.f32 %v359, %v1889
        %v1932 = vadd.f32 %v360, %v1892
        %v1933 = vadd.f32 %v361, %v1897
        %v1934 = vadd.f32 %v362, %v1900
        %1935 = vst [vmem:[%s289] sm:$0xff] %v1903
        %1936 = vst [vmem:[%s289 + $0x8] sm:$0xff] %v1904
        %1937 = vst [vmem:[%s289 + $0x10] sm:$0xff] %v1905
        %1938 = vst [vmem:[%s289 + $0x18] sm:$0xff] %v1906
        %1939 = vst [vmem:[%s289 + $0x20] sm:$0xff] %v1907
        %1940 = vst [vmem:[%s289 + $0x28] sm:$0xff] %v1908
        %1941 = vst [vmem:[%s289 + $0x30] sm:$0xff] %v1909
        %1942 = vst [vmem:[%s289 + $0x38] sm:$0xff] %v1910
        %1943 = vst [vmem:[%s289 + $0x40] sm:$0xff] %v1911
        %1944 = vst [vmem:[%s289 + $0x48] sm:$0xff] %v1912
        %1945 = vst [vmem:[%s289 + $0x50] sm:$0xff] %v1913
        %1946 = vst [vmem:[%s289 + $0x58] sm:$0xff] %v1914
        %1947 = vst [vmem:[%s289 + $0x60] sm:$0xff] %v1915
        %1948 = vst [vmem:[%s289 + $0x68] sm:$0xff] %v1916
        %1949 = vst [vmem:[%s289 + $0x70] sm:$0xff] %v1917
        %1950 = vst [vmem:[%s289 + $0x78] sm:$0xff] %v1918
        %1951 = vst [vmem:[%s289 + $0x80] sm:$0xff] %v1919
        %1952 = vst [vmem:[%s289 + $0x88] sm:$0xff] %v1920
        %1953 = vst [vmem:[%s289 + $0x90] sm:$0xff] %v1921
        %1954 = vst [vmem:[%s289 + $0x98] sm:$0xff] %v1922
        %1955 = vst [vmem:[%s289 + $0xa0] sm:$0xff] %v1923
        %1956 = vst [vmem:[%s289 + $0xa8] sm:$0xff] %v1924
        %1957 = vst [vmem:[%s289 + $0xb0] sm:$0xff] %v1925
        %1958 = vst [vmem:[%s289 + $0xb8] sm:$0xff] %v1926
        %1959 = vst [vmem:[%s289 + $0xc0] sm:$0xff] %v1927
        %1960 = vst [vmem:[%s289 + $0xc8] sm:$0xff] %v1928
        %1961 = vst [vmem:[%s289 + $0xd0] sm:$0xff] %v1929
        %1962 = vst [vmem:[%s289 + $0xd8] sm:$0xff] %v1930
        %1963 = vst [vmem:[%s289 + $0xe0] sm:$0xff] %v1931
        %1964 = vst [vmem:[%s289 + $0xe8] sm:$0xff] %v1932
        %1965 = vst [vmem:[%s289 + $0xf0] sm:$0xff] %v1933
        %1966 = vst [vmem:[%s289 + $0xf8] sm:$0xff] %v1934
        %p1967 = scmp.eq.s32.totalorder %s30, 1
        // Predicated region
        $region49: #{tpu_custom_call.1} parent=31 // pred_check
          %p1968 = pneg %p1967
        $region50: #{tpu_custom_call.1} parent=31 // pred_check_branch
          %1970 = sbr.rel (%p1968) target = $region52
        $region51: #{tpu_custom_call.1} parent=31 // pred_region
          %v1971 = vld [vmem:[%s289] sm:$0xff]
          %v1972 = vld [vmem:[%s289 + $0x8] sm:$0xff]
          %v1973 = vld [vmem:[%s289 + $0x10] sm:$0xff]
          %v1974 = vld [vmem:[%s289 + $0x18] sm:$0xff]
          %v1975 = vld [vmem:[%s289 + $0x20] sm:$0xff]
          %v1976 = vld [vmem:[%s289 + $0x28] sm:$0xff]
          %v1977 = vld [vmem:[%s289 + $0x30] sm:$0xff]
          %v1978 = vld [vmem:[%s289 + $0x38] sm:$0xff]
          %v1979 = vld [vmem:[%s289 + $0x40] sm:$0xff]
          %v1980 = vld [vmem:[%s289 + $0x48] sm:$0xff]
          %v1981 = vld [vmem:[%s289 + $0x50] sm:$0xff]
          %v1982 = vld [vmem:[%s289 + $0x58] sm:$0xff]
          %v1983 = vld [vmem:[%s289 + $0x60] sm:$0xff]
          %v1984 = vld [vmem:[%s289 + $0x68] sm:$0xff]
          %v1985 = vld [vmem:[%s289 + $0x70] sm:$0xff]
          %v1986 = vld [vmem:[%s289 + $0x78] sm:$0xff]
          %v1987 = vld [vmem:[%s289 + $0x80] sm:$0xff]
          %v1988 = vld [vmem:[%s289 + $0x88] sm:$0xff]
          %v1989 = vld [vmem:[%s289 + $0x90] sm:$0xff]
          %v1990 = vld [vmem:[%s289 + $0x98] sm:$0xff]
          %v1991 = vld [vmem:[%s289 + $0xa0] sm:$0xff]
          %v1992 = vld [vmem:[%s289 + $0xa8] sm:$0xff]
          %v1993 = vld [vmem:[%s289 + $0xb0] sm:$0xff]
          %v1994 = vld [vmem:[%s289 + $0xb8] sm:$0xff]
          %v1995 = vld [vmem:[%s289 + $0xc0] sm:$0xff]
          %v1996 = vld [vmem:[%s289 + $0xc8] sm:$0xff]
          %v1997 = vld [vmem:[%s289 + $0xd0] sm:$0xff]
          %v1998 = vld [vmem:[%s289 + $0xd8] sm:$0xff]
          %v1999 = vld [vmem:[%s289 + $0xe0] sm:$0xff]
          %v2000 = vld [vmem:[%s289 + $0xe8] sm:$0xff]
          %v2001 = vld [vmem:[%s289 + $0xf0] sm:$0xff]
          %v2002 = vld [vmem:[%s289 + $0xf8] sm:$0xff]
          %v2003 = vld [vmem:[%s258] sm:$0x1]
          %v2005 = vlaneseq
          %v2006 = vshrl.u32 %v2005, 7
          %v2007 = vsub.s32 0, %v2006
          %v2008 = vrot.slane %v2003, %v2007
          %v2010 = vadd.f32 %v1971, %v2008
          %v2011 = vadd.f32 %v1972, %v2008
          %v2012 = vadd.f32 %v1973, %v2008
          %v2013 = vadd.f32 %v1974, %v2008
          %v2014 = vadd.f32 %v1975, %v2008
          %v2015 = vadd.f32 %v1976, %v2008
          %v2016 = vadd.f32 %v1977, %v2008
          %v2017 = vadd.f32 %v1978, %v2008
          %v2018 = vadd.f32 %v1979, %v2008
          %v2019 = vadd.f32 %v1980, %v2008
          %v2020 = vadd.f32 %v1981, %v2008
          %v2021 = vadd.f32 %v1982, %v2008
          %v2022 = vadd.f32 %v1983, %v2008
          %v2023 = vadd.f32 %v1984, %v2008
          %v2024 = vadd.f32 %v1985, %v2008
          %v2025 = vadd.f32 %v1986, %v2008
          %v2026 = vadd.f32 %v1987, %v2008
          %v2027 = vadd.f32 %v1988, %v2008
          %v2028 = vadd.f32 %v1989, %v2008
          %v2029 = vadd.f32 %v1990, %v2008
          %v2030 = vadd.f32 %v1991, %v2008
          %v2031 = vadd.f32 %v1992, %v2008
          %v2032 = vadd.f32 %v1993, %v2008
          %v2033 = vadd.f32 %v1994, %v2008
          %v2034 = vadd.f32 %v1995, %v2008
          %v2035 = vadd.f32 %v1996, %v2008
          %v2036 = vadd.f32 %v1997, %v2008
          %v2037 = vadd.f32 %v1998, %v2008
          %v2038 = vadd.f32 %v1999, %v2008
          %v2039 = vadd.f32 %v2000, %v2008
          %v2040 = vadd.f32 %v2001, %v2008
          %v2041 = vadd.f32 %v2002, %v2008
          %2042 = vst [vmem:[%s289] sm:$0xff] %v2010
          %2043 = vst [vmem:[%s289 + $0x8] sm:$0xff] %v2011
          %2044 = vst [vmem:[%s289 + $0x10] sm:$0xff] %v2012
          %2045 = vst [vmem:[%s289 + $0x18] sm:$0xff] %v2013
          %2046 = vst [vmem:[%s289 + $0x20] sm:$0xff] %v2014
          %2047 = vst [vmem:[%s289 + $0x28] sm:$0xff] %v2015
          %2048 = vst [vmem:[%s289 + $0x30] sm:$0xff] %v2016
          %2049 = vst [vmem:[%s289 + $0x38] sm:$0xff] %v2017
          %2050 = vst [vmem:[%s289 + $0x40] sm:$0xff] %v2018
          %2051 = vst [vmem:[%s289 + $0x48] sm:$0xff] %v2019
          %2052 = vst [vmem:[%s289 + $0x50] sm:$0xff] %v2020
          %2053 = vst [vmem:[%s289 + $0x58] sm:$0xff] %v2021
          %2054 = vst [vmem:[%s289 + $0x60] sm:$0xff] %v2022
          %2055 = vst [vmem:[%s289 + $0x68] sm:$0xff] %v2023
          %2056 = vst [vmem:[%s289 + $0x70] sm:$0xff] %v2024
          %2057 = vst [vmem:[%s289 + $0x78] sm:$0xff] %v2025
          %2058 = vst [vmem:[%s289 + $0x80] sm:$0xff] %v2026
          %2059 = vst [vmem:[%s289 + $0x88] sm:$0xff] %v2027
          %2060 = vst [vmem:[%s289 + $0x90] sm:$0xff] %v2028
          %2061 = vst [vmem:[%s289 + $0x98] sm:$0xff] %v2029
          %2062 = vst [vmem:[%s289 + $0xa0] sm:$0xff] %v2030
          %2063 = vst [vmem:[%s289 + $0xa8] sm:$0xff] %v2031
          %2064 = vst [vmem:[%s289 + $0xb0] sm:$0xff] %v2032
          %2065 = vst [vmem:[%s289 + $0xb8] sm:$0xff] %v2033
          %2066 = vst [vmem:[%s289 + $0xc0] sm:$0xff] %v2034
          %2067 = vst [vmem:[%s289 + $0xc8] sm:$0xff] %v2035
          %2068 = vst [vmem:[%s289 + $0xd0] sm:$0xff] %v2036
          %2069 = vst [vmem:[%s289 + $0xd8] sm:$0xff] %v2037
          %2070 = vst [vmem:[%s289 + $0xe0] sm:$0xff] %v2038
          %2071 = vst [vmem:[%s289 + $0xe8] sm:$0xff] %v2039
          %2072 = vst [vmem:[%s289 + $0xf0] sm:$0xff] %v2040
          %2073 = vst [vmem:[%s289 + $0xf8] sm:$0xff] %v2041
        $region52: #{tpu_custom_call.1} parent=31 // pred_fallthru
          _
        %s2074 = sand.u32 %s134, 1
        %s2075 = scalar_lea.sflag [#allocation4], %s2074
        %s2076 = sand.u32 %s134, 1
        %s2077 = smul.addr %s2076, 256
        %s2078 = scalar_lea.vmem [#allocation8], %s2077
        // Predicated region
        $region53: #{tpu_custom_call.1} parent=31 // pred_check
          %p2079 = pneg %p144
        $region54: #{tpu_custom_call.1} parent=31 // pred_check_branch
          %2081 = sbr.rel (%p2079) target = $region56
        $region55: #{tpu_custom_call.1} parent=31 // pred_region
          %s2082 = smul.u32 32, %s28
          %s2084 = ssub.s32 4096, 4096
          %2085 = vsyncadd %s2075, %s2084
          %s2086 = smul.addr %s2082, 3
          %s2087 = sadd.s32 %s29, %s2086
          %s2088 = smul.addr %s2087, 128
          %s2089 = scalar_lea.hbm %s3, %s2088
          %s2090 = sshll.u32 %s2078, 4
          %s2091 = int_to_ptr.vmem [resolvable:$true] %s2090
          %2096 = dma.vmem_to_hbm [thread:$0]  %s2091, 4096, %s2089, %s2075, 128, 384, 8
        $region56: #{tpu_custom_call.1} parent=31 // pred_fallthru
          _
      $region32: #{tpu_custom_call.1} parent=5 // pred_fallthru
        _
      %p2097 = scmp.le.s32.totalorder 2, %s18
      // Predicated region
      $region57: #{tpu_custom_call.1} parent=5 // pred_check
        %p2098 = pneg %p2097
      $region58: #{tpu_custom_call.1} parent=5 // pred_check_branch
        %2100 = sbr.rel (%p2098) target = $region60
      $region59: #{tpu_custom_call.1} parent=5 // pred_region
        %s2101 = ssub.s32 %s18, 2
        // Predicated region
        $region61: #{tpu_custom_call.1} parent=59 // pred_check
          %p2102 = pneg %p150
        $region62: #{tpu_custom_call.1} parent=59 // pred_check_branch
          %2104 = sbr.rel (%p2102) target = $region64
        $region63: #{tpu_custom_call.1} parent=59 // pred_region
          %s2105 = sand.u32 %s135, 1
          %s2106 = scalar_lea.sflag [#allocation4], %s2105
          %s2107 = sand.u32 %s135, 1
          %s2108 = smul.addr %s2107, 256
          %s2109 = scalar_lea.vmem [#allocation8], %s2108
          %2110 = dma.done %s2106, 4096
        $region64: #{tpu_custom_call.1} parent=59 // pred_fallthru
          _
      $region60: #{tpu_custom_call.1} parent=5 // pred_fallthru
        _
    $region6: #{tpu_custom_call.1} parent=1 // loop_footer
      %s22 = sadd.s32 1, %s18
    $region7: #{tpu_custom_call.1} parent=1 // loop_footer_branch
      %17 = sbr.rel target = $region3
    $region8: #{tpu_custom_call.1} parent=1 // loop_exit
      _
    %2111 = vsyncpa [#allocation3], 1
    %s2112 = scalar_lea.sflag [#allocation3], 1
    %2113 = vsyncpa %s2112, 1
    %2114 = vsyncpa [#allocation6], 1
    %s2115 = scalar_lea.sflag [#allocation6], 1
    %2116 = vsyncpa %s2115, 1
    %2117 = vsyncpa [#allocation4], 1
    %s2118 = scalar_lea.sflag [#allocation4], 1
    %2119 = vsyncpa %s2118, 1

</llo_original>
